<compile_context>
chip_gen: v5e
topology: v5e:2x2
jax: 0.10.0
libtpu: 0.0.40
codegen_flags: <defaults>
</compile_context>

<pallas_src>
import functools

import jax
import jax.numpy as jnp
from jax.experimental import pallas as pl
from jax.experimental.pallas import tpu as pltpu


# ----------------------------------------------------------------------------
# In-kernel helper: max & min over the P lane-groups of a packed [VB, P*U] array
# ----------------------------------------------------------------------------
def _group_max_min(z, n_points, n_units):
    P, U = n_points, n_units
    if P > 1 and (P & (P - 1)) == 0:
        # log2(P) roll tree: shifts P*U/2 ... U are multiples of 128 except the last one,
        # so they are nearly free vreg shuffles on the XLU.
        zmax, zmin = z, z
        s = (P * U) // 2
        while s >= U:
            zmax = jnp.maximum(zmax, pltpu.roll(zmax, shift=s, axis=1))
            zmin = jnp.minimum(zmin, pltpu.roll(zmin, shift=s, axis=1))
            s //= 2
        return zmax[:, :U], zmin[:, :U]
    # Fallback (non-power-of-two P): pairwise slice tree.
    pmax = [z[:, p * U:(p + 1) * U] for p in range(P)]
    pmin = list(pmax)
    while len(pmax) > 1:
        nmax = [jnp.maximum(pmax[i], pmax[i + 1]) for i in range(0, len(pmax) - 1, 2)]
        nmin = [jnp.minimum(pmin[i], pmin[i + 1]) for i in range(0, len(pmin) - 1, 2)]
        if len(pmax) % 2:
            nmax.append(pmax[-1])
            nmin.append(pmin[-1])
        pmax, pmin = nmax, nmin
    return pmax[0], pmin[0]


# ----------------------------------------------------------------------------
# Fused kernel: project + mask, emit partial BN stats and per-pillar max/min of z
# ----------------------------------------------------------------------------
def _pfn_fused_kernel(f2_ref, aux_ref, gid_ref, gsum8_ref, wbig_ref, wcorr_ref,
                      psum_ref, minmax_ref, *, n_points, n_units):
    P, U = n_points, n_units
    f2 = f2_ref[...]                                    # [VB, P*Cin]   packed points
    aux = aux_ref[...]                                  # [VB, 8]  (nvox, 1/nvox, xa, ya, 0..)

    # Main projection, K = P*Cin exactly: no dependency on the per-pillar terms.
    z = jnp.dot(f2, wbig_ref[...], preferred_element_type=jnp.float32)        # [VB, P*U]

    # Per-pillar correction: xyz sums land in columns 4:7 of sum8 (g_sum8 layout), anchors
    # sit in columns 2:3 of aux; one small K=8 matmul applies both, pre-tiled across P.
    sum8 = jnp.dot(f2, gsum8_ref[...], preferred_element_type=jnp.float32)    # [VB, 8]
    corr_lhs = aux + sum8 * aux[:, 1:2]                                       # [VB, 8]
    z = z + jnp.dot(corr_lhs, wcorr_ref[...], preferred_element_type=jnp.float32)

    # Padding mask: one compare + one select against the precomputed group-id row.
    z = jnp.where(gid_ref[...] < aux[:, 0:1], z, 0.0)                         # [VB, P*U]

    # Partial BatchNorm statistics for this block.
    psum_ref[0] = jnp.concatenate(
        [jnp.sum(z, axis=0, keepdims=True),
         jnp.sum(z * z, axis=0, keepdims=True)], axis=0)                      # [2, P*U]

    # Per-pillar per-channel max / min over the P point slots (lane-dense [VB, 2*U] store).
    zmax, zmin = _group_max_min(z, P, U)
    minmax_ref[...] = jnp.concatenate([zmax, zmin], axis=1)                   # [VB, 2*U]


# ----------------------------------------------------------------------------
# Wrapper
# ----------------------------------------------------------------------------
def _pad_rows(a, n_rows):
    pad = n_rows - a.shape[0]
    if pad == 0:
        return a
    return jnp.pad(a, ((0, pad),) + ((0, 0),) * (a.ndim - 1))


@functools.partial(jax.jit, static_argnames=("voxel_size", "pc_range", "voxel_block"))
def pillar_feature_net_forward(features, num_voxels, coors, linear_w, bn_gamma, bn_beta,
                               *, voxel_size=(0.2, 0.2, 4.0),
                               pc_range=(0.0, -40.0, -3.0, 70.4, 40.0, 1.0),
                               voxel_block=256):
    """PillarFeatureNet forward.

    features:   [V, P, Cin] f32   (x, y, z, reflectance; padded point slots are zero)
    num_voxels: [V] int32         (number of valid points per pillar, >= 1)
    coors:      [V, 4] int32      (sample, z, y, x pillar indices)
    linear_w:   [Cin + 5, U] f32  (PFN Linear weight, [in, out] layout, bias=False)
    bn_gamma, bn_beta: [U] f32    (BatchNorm1d affine parameters)
    Returns [V, U] f32 (the `features.squeeze()` of the reference).
    """
    V, P, Cin = features.shape
    Caug, U = linear_w.shape
    assert Caug == Cin + 5 and Cin >= 3

    vx, vy = float(voxel_size[0]), float(voxel_size[1])
    x_offset = vx / 2.0 + float(pc_range[0])
    y_offset = vy / 2.0 + float(pc_range[1])

    VB = int(voxel_block)
    assert VB % 8 == 0
    n_blocks = -(-V // VB)
    V_pad = n_blocks * VB

    # ---- packed, lane-dense inputs ----
    f2 = _pad_rows(features.reshape(V, P * Cin).astype(jnp.float32), V_pad)

    nvox_f = num_voxels.astype(jnp.float32)
    zeros = jnp.zeros_like(nvox_f)
    aux = jnp.stack([
        nvox_f,                                               # col 0: valid-point count
        1.0 / jnp.maximum(nvox_f, 1.0),                       # col 1: 1 / nvox
        coors[:, 3].astype(jnp.float32) * vx + x_offset,      # col 2: pillar center x
        coors[:, 2].astype(jnp.float32) * vy + y_offset,      # col 3: pillar center y
        zeros, zeros, zeros, zeros], axis=1)                  # cols 4-7: xyz-mean slots / pad
    aux = _pad_rows(aux, V_pad)      # grid-padded pillars: nvox = 0 -> fully masked

    # Constant group-id row for the padding mask (one compare + select in-kernel).
    gid = (jnp.arange(P * U, dtype=jnp.int32) // U).astype(jnp.float32).reshape(1, P * U)

    # ---- fold augmentation + Linear into packed weights (wrapper-side, traced once) ----
    w = linear_w.astype(jnp.float32)
    w_comb = w[:Cin]
    w_comb = w_comb.at[0:3].add(w[Cin:Cin + 3])          # f_cluster shares raw channels x,y,z
    w_comb = w_comb.at[0:2].add(w[Cin + 3:Cin + 5])      # f_center shares raw channels x,y
    w_big = jnp.kron(jnp.eye(P, dtype=jnp.float32), w_comb)              # [P*Cin, P*U]

    g_sum8 = jnp.zeros((P * Cin, 8), jnp.float32)
    g_sum8 = g_sum8.at[:, 4:7].set(jnp.tile(jnp.eye(Cin, 3, dtype=jnp.float32), (P, 1)))

    w_corr = jnp.zeros((8, P * U), jnp.float32)
    w_corr = w_corr.at[2].set(jnp.tile(-w[Cin + 3], P))                  # x_anchor row
    w_corr = w_corr.at[3].set(jnp.tile(-w[Cin + 4], P))                  # y_anchor row
    w_corr = w_corr.at[4:7].set(jnp.tile(-w[Cin:Cin + 3], (1, P)))       # xyz-mean rows

    in_specs = [
        pl.BlockSpec((VB, P * Cin), lambda i: (i, 0)),
        pl.BlockSpec((VB, 8), lambda i: (i, 0)),
        pl.BlockSpec((1, P * U), lambda i: (0, 0)),
        pl.BlockSpec((P * Cin, 8), lambda i: (0, 0)),
        pl.BlockSpec((P * Cin, P * U), lambda i: (0, 0)),
        pl.BlockSpec((8, P * U), lambda i: (0, 0)),
    ]
    out_specs = [
        pl.BlockSpec((1, 2, P * U), lambda i: (i, 0, 0)),
        pl.BlockSpec((VB, 2 * U), lambda i: (i, 0)),
    ]

    psums, minmax = pl.pallas_call(
        functools.partial(_pfn_fused_kernel, n_points=P, n_units=U),
        out_shape=(jax.ShapeDtypeStruct((n_blocks, 2, P * U), jnp.float32),
                   jax.ShapeDtypeStruct((V_pad, 2 * U), jnp.float32)),
        grid=(n_blocks,),
        in_specs=in_specs,
        out_specs=out_specs,
        compiler_params=pltpu.CompilerParams(
            dimension_semantics=("parallel",),
            vmem_limit_bytes=48 * 1024 * 1024),
    )(f2, aux, gid, g_sum8, w_big, w_corr)

    # ---- tiny plain-JAX epilogue: batch statistics + monotone BN/ReLU/max ----
    count = jnp.float32(V * P)                    # true rows only; grid padding contributes 0
    totals = jnp.sum(psums.reshape(n_blocks, 2, P, U), axis=(0, 2))            # [2, U]
    mu = totals[0] / count
    var = jnp.maximum(totals[1] / count - mu * mu, 0.0)
    scale = bn_gamma.astype(jnp.float32) * jax.lax.rsqrt(var + 1e-3)           # eps = 0.001
    shift = bn_beta.astype(jnp.float32) - mu * scale

    minmax = minmax[:V]
    # BN is a per-channel affine and ReLU/max are monotone:
    #   max_p relu(scale*z_p + shift) = relu(scale * (max_z if scale>=0 else min_z) + shift)
    z_sel = jnp.where(scale[None, :] >= 0.0, minmax[:, :U], minmax[:, U:])
    return jnp.maximum(z_sel * scale[None, :] + shift[None, :], 0.0)           # [V, U]


# ----------------------------------------------------------------------------
# Pure-JAX reference (mirrors the PyTorch module) for validation
# ----------------------------------------------------------------------------
def _reference_forward(features, num_voxels, coors, linear_w, bn_gamma, bn_beta,
                       *, voxel_size, pc_range):
    vx, vy = voxel_size[0], voxel_size[1]
    x_offset = vx / 2.0 + pc_range[0]
    y_offset = vy / 2.0 + pc_range[1]
    V, P, _ = features.shape
    nv = num_voxels.astype(jnp.float32).reshape(V, 1, 1)
    points_mean = jnp.sum(features[:, :, :3], axis=1, keepdims=True) / nv
    f_cluster = features[:, :, :3] - points_mean
    fcx = features[:, :, 0:1] - (coors[:, 3].astype(jnp.float32)[:, None, None] * vx + x_offset)
    fcy = features[:, :, 1:2] - (coors[:, 2].astype(jnp.float32)[:, None, None] * vy + y_offset)
    feat = jnp.concatenate([features, f_cluster, fcx, fcy], axis=-1)
    mask = (jnp.arange(P)[None, :, None] < num_voxels[:, None, None]).astype(feat.dtype)
    feat = feat * mask
    z = jnp.einsum("vpc,cu->vpu", feat, linear_w, precision=jax.lax.Precision.HIGHEST)
    z2 = z.reshape(V * P, -1)
    mu = jnp.mean(z2, axis=0)
    var = jnp.mean(jnp.square(z2 - mu), axis=0)
    zn = (z - mu) * jax.lax.rsqrt(var + 1e-3) * bn_gamma + bn_beta
    return jnp.max(jnp.maximum(zn, 0.0), axis=1)


if __name__ == "__main__":
    # Small but representative shapes: 100 pillars, 32 points per pillar, 4 raw point
    # features (x, y, z, reflectance); num_filters=(64,) -> single PFNLayer with 64 units.
    V, P, Cin, U = 100, 32, 4, 64
    voxel_size = (0.2, 0.2, 4.0)
    pc_range = (0.0, -40.0, -3.0, 70.4, 40.0, 1.0)

    key = jax.random.PRNGKey(0)
    k_xyz, k_r, k_n, k_cx, k_cy, k_w, k_g, k_b = jax.random.split(key, 8)

    num_voxels = jax.random.randint(k_n, (V,), 1, P + 1, dtype=jnp.int32)
    lo = jnp.array([pc_range[0], pc_range[1], pc_range[2]], jnp.float32)
    hi = jnp.array([pc_range[3], pc_range[4], pc_range[5]], jnp.float32)
    xyz = lo + (hi - lo) * jax.random.uniform(k_xyz, (V, P, 3), jnp.float32)
    refl = jax.random.uniform(k_r, (V, P, 1), jnp.float32)
    features = jnp.concatenate([xyz, refl], axis=-1)
    # zero out padded point slots, exactly what the voxel generator would produce
    pad_mask = (jnp.arange(P)[None, :, None] < num_voxels[:, None, None]).astype(jnp.float32)
    features = features * pad_mask

    coors = jnp.stack([
        jnp.zeros((V,), jnp.int32),                                   # sample index
        jnp.zeros((V,), jnp.int32),                                   # z index
        jax.random.randint(k_cy, (V,), 0, 400, dtype=jnp.int32),      # pillar y index
        jax.random.randint(k_cx, (V,), 0, 352, dtype=jnp.int32),      # pillar x index
    ], axis=1)

    linear_w = 0.1 * jax.random.normal(k_w, (Cin + 5, U), jnp.float32)   # Linear(9, 64), no bias
    bn_gamma = jax.random.normal(k_g, (U,), jnp.float32)   # mixed-sign gamma: exercises
    bn_beta = 0.1 * jax.random.normal(k_b, (U,), jnp.float32)  # both max- and min-branches

    out = pillar_feature_net_forward(features, num_voxels, coors, linear_w, bn_gamma, bn_beta,
                                     voxel_size=voxel_size, pc_range=pc_range, voxel_block=32)
    out = jax.block_until_ready(out)
    assert out.shape == (V, U) and out.dtype == jnp.float32

    ref = _reference_forward(features, num_voxels, coors, linear_w, bn_gamma, bn_beta,
                             voxel_size=voxel_size, pc_range=pc_range)
    err = float(jnp.max(jnp.abs(out - ref)))
    assert err < 2e-2, f"mismatch vs pure-JAX reference: max abs err = {err}"
    print("KERNEL_OK")
</pallas_src>

<mosaic_0001>
module attributes {stable_mosaic.version = 11 : i64} {
  func.func @_pfn_fused_kernel(%arg0: i32, %arg1: memref<32x128xf32, #tpu.memory_space<vmem>>, %arg2: memref<32x8xf32, #tpu.memory_space<vmem>>, %arg3: memref<1x2048xf32, #tpu.memory_space<vmem>>, %arg4: memref<128x8xf32, #tpu.memory_space<vmem>>, %arg5: memref<128x2048xf32, #tpu.memory_space<vmem>>, %arg6: memref<8x2048xf32, #tpu.memory_space<vmem>>, %arg7: memref<1x2x2048xf32, #tpu.memory_space<vmem>>, %arg8: memref<32x128xf32, #tpu.memory_space<vmem>>) attributes {dimension_semantics = [#tpu.dimension_semantics<parallel>], iteration_bounds = array<i64: 4>, scalar_prefetch = 0 : i64, scratch_operands = 0 : i64, tpu.core_type = #tpu.core_type<tc>, window_params = [{transform_indices = @transform_0, window_bounds = array<i64: 32, 128>}, {transform_indices = @transform_1, window_bounds = array<i64: 32, 8>}, {pipeline_mode = #tpu.pipeline_mode<synchronous>, transform_indices = @transform_2, window_bounds = array<i64: 1, 2048>}, {pipeline_mode = #tpu.pipeline_mode<synchronous>, transform_indices = @transform_3, window_bounds = array<i64: 128, 8>}, {pipeline_mode = #tpu.pipeline_mode<synchronous>, transform_indices = @transform_4, window_bounds = array<i64: 128, 2048>}, {pipeline_mode = #tpu.pipeline_mode<synchronous>, transform_indices = @transform_5, window_bounds = array<i64: 8, 2048>}, {transform_indices = @transform_6, window_bounds = array<i64: 1, 2, 2048>}, {transform_indices = @transform_7, window_bounds = array<i64: 32, 128>}]} {
    %c0 = arith.constant 0 : index
    %c0_0 = arith.constant 0 : index
    %0 = vector.load %arg1[%c0, %c0_0] : memref<32x128xf32, #tpu.memory_space<vmem>>, vector<32x128xf32>
    %c0_1 = arith.constant 0 : index
    %c0_2 = arith.constant 0 : index
    %1 = vector.load %arg2[%c0_1, %c0_2] : memref<32x8xf32, #tpu.memory_space<vmem>>, vector<32x8xf32>
    %c0_3 = arith.constant 0 : index
    %c0_4 = arith.constant 0 : index
    %2 = vector.load %arg5[%c0_3, %c0_4] : memref<128x2048xf32, #tpu.memory_space<vmem>>, vector<128x2048xf32>
    %cst = arith.constant dense<0.000000e+00> : vector<32x2048xf32>
    %3 = tpu.matmul %0, %2, %cst {dimension_numbers = #tpu.dot_dimension_numbers<[1], [0], [0], [1], [0, 0, 1, 1], [], []>} : vector<32x128xf32>, vector<128x2048xf32>, vector<32x2048xf32> -> vector<32x2048xf32>
    %c0_5 = arith.constant 0 : index
    %c0_6 = arith.constant 0 : index
    %4 = vector.load %arg4[%c0_5, %c0_6] : memref<128x8xf32, #tpu.memory_space<vmem>>, vector<128x8xf32>
    %cst_7 = arith.constant dense<0.000000e+00> : vector<32x8xf32>
    %5 = tpu.matmul %0, %4, %cst_7 {dimension_numbers = #tpu.dot_dimension_numbers<[1], [0], [0], [1], [0, 0, 1, 1], [], []>} : vector<32x128xf32>, vector<128x8xf32>, vector<32x8xf32> -> vector<32x8xf32>
    %6 = vector.extract_strided_slice %1 {offsets = [0, 1], sizes = [32, 1], strides = [1, 1]} : vector<32x8xf32> to vector<32x1xf32>
    %7 = vector.broadcast %6 : vector<32x1xf32> to vector<32x8xf32>
    %8 = arith.mulf %5, %7 : vector<32x8xf32>
    %9 = arith.addf %1, %8 : vector<32x8xf32>
    %c0_8 = arith.constant 0 : index
    %c0_9 = arith.constant 0 : index
    %10 = vector.load %arg6[%c0_8, %c0_9] : memref<8x2048xf32, #tpu.memory_space<vmem>>, vector<8x2048xf32>
    %cst_10 = arith.constant dense<0.000000e+00> : vector<32x2048xf32>
    %11 = tpu.matmul %9, %10, %cst_10 {dimension_numbers = #tpu.dot_dimension_numbers<[1], [0], [0], [1], [0, 0, 1, 1], [], []>} : vector<32x8xf32>, vector<8x2048xf32>, vector<32x2048xf32> -> vector<32x2048xf32>
    %12 = arith.addf %3, %11 : vector<32x2048xf32>
    %c0_11 = arith.constant 0 : index
    %c0_12 = arith.constant 0 : index
    %13 = vector.load %arg3[%c0_11, %c0_12] : memref<1x2048xf32, #tpu.memory_space<vmem>>, vector<1x2048xf32>
    %14 = vector.extract_strided_slice %1 {offsets = [0, 0], sizes = [32, 1], strides = [1, 1]} : vector<32x8xf32> to vector<32x1xf32>
    %15 = vector.broadcast %13 : vector<1x2048xf32> to vector<32x2048xf32>
    %16 = vector.broadcast %14 : vector<32x1xf32> to vector<32x2048xf32>
    %17 = arith.cmpf olt, %15, %16 : vector<32x2048xf32>
    %cst_13 = arith.constant 0.000000e+00 : f32
    %18 = vector.broadcast %cst_13 : f32 to vector<32x2048xf32>
    %19 = arith.select %17, %12, %18 : vector<32x2048xi1>, vector<32x2048xf32>
    %cst_14 = arith.constant dense<0.000000e+00> : vector<2048xf32>
    %20 = vector.multi_reduction <add>, %19, %cst_14 [0] : vector<32x2048xf32> to vector<2048xf32>
    %21 = vector.shape_cast %20 : vector<2048xf32> to vector<1x2048xf32>
    %22 = arith.mulf %19, %19 : vector<32x2048xf32>
    %cst_15 = arith.constant dense<0.000000e+00> : vector<2048xf32>
    %23 = vector.multi_reduction <add>, %22, %cst_15 [0] : vector<32x2048xf32> to vector<2048xf32>
    %24 = vector.shape_cast %23 : vector<2048xf32> to vector<1x2048xf32>
    %25 = tpu.concatenate %21, %24 in 0 : vector<1x2048xf32>, vector<1x2048xf32> -> vector<2x2048xf32>
    %c0_16 = arith.constant 0 : index
    %c0_17 = arith.constant 0 : index
    %c0_18 = arith.constant 0 : index
    %26 = vector.load %arg7[%c0_16, %c0_17, %c0_18] : memref<1x2x2048xf32, #tpu.memory_space<vmem>>, vector<1x2x2048xf32>
    %27 = vector.shape_cast %26 : vector<1x2x2048xf32> to vector<2x2048xf32>
    %28 = vector.shape_cast %25 : vector<2x2048xf32> to vector<1x2x2048xf32>
    tpu.vector_store %arg7[%c0_16, %c0_17, %c0_18], %28 {strides = array<i32>} : memref<1x2x2048xf32, #tpu.memory_space<vmem>>, vector<1x2x2048xf32>,
    %c1024_i32 = arith.constant 1024 : i32
    %29 = tpu.dynamic_rotate %19 by %c1024_i32 dim 1 : vector<32x2048xf32>, i32 -> vector<32x2048xf32>
    %30 = arith.maximumf %19, %29 : vector<32x2048xf32>
    %c1024_i32_19 = arith.constant 1024 : i32
    %31 = tpu.dynamic_rotate %19 by %c1024_i32_19 dim 1 : vector<32x2048xf32>, i32 -> vector<32x2048xf32>
    %32 = arith.minimumf %19, %31 : vector<32x2048xf32>
    %c512_i32 = arith.constant 512 : i32
    %33 = tpu.dynamic_rotate %30 by %c512_i32 dim 1 : vector<32x2048xf32>, i32 -> vector<32x2048xf32>
    %34 = arith.maximumf %30, %33 : vector<32x2048xf32>
    %c512_i32_20 = arith.constant 512 : i32
    %35 = tpu.dynamic_rotate %32 by %c512_i32_20 dim 1 : vector<32x2048xf32>, i32 -> vector<32x2048xf32>
    %36 = arith.minimumf %32, %35 : vector<32x2048xf32>
    %c256_i32 = arith.constant 256 : i32
    %37 = tpu.dynamic_rotate %34 by %c256_i32 dim 1 : vector<32x2048xf32>, i32 -> vector<32x2048xf32>
    %38 = arith.maximumf %34, %37 : vector<32x2048xf32>
    %c256_i32_21 = arith.constant 256 : i32
    %39 = tpu.dynamic_rotate %36 by %c256_i32_21 dim 1 : vector<32x2048xf32>, i32 -> vector<32x2048xf32>
    %40 = arith.minimumf %36, %39 : vector<32x2048xf32>
    %c128_i32 = arith.constant 128 : i32
    %41 = tpu.dynamic_rotate %38 by %c128_i32 dim 1 : vector<32x2048xf32>, i32 -> vector<32x2048xf32>
    %42 = arith.maximumf %38, %41 : vector<32x2048xf32>
    %c128_i32_22 = arith.constant 128 : i32
    %43 = tpu.dynamic_rotate %40 by %c128_i32_22 dim 1 : vector<32x2048xf32>, i32 -> vector<32x2048xf32>
    %44 = arith.minimumf %40, %43 : vector<32x2048xf32>
    %c64_i32 = arith.constant 64 : i32
    %45 = tpu.dynamic_rotate %42 by %c64_i32 dim 1 : vector<32x2048xf32>, i32 -> vector<32x2048xf32>
    %46 = arith.maximumf %42, %45 : vector<32x2048xf32>
    %c64_i32_23 = arith.constant 64 : i32
    %47 = tpu.dynamic_rotate %44 by %c64_i32_23 dim 1 : vector<32x2048xf32>, i32 -> vector<32x2048xf32>
    %48 = arith.minimumf %44, %47 : vector<32x2048xf32>
    %49 = vector.extract_strided_slice %46 {offsets = [0, 0], sizes = [32, 64], strides = [1, 1]} : vector<32x2048xf32> to vector<32x64xf32>
    %50 = vector.extract_strided_slice %48 {offsets = [0, 0], sizes = [32, 64], strides = [1, 1]} : vector<32x2048xf32> to vector<32x64xf32>
    %51 = tpu.concatenate %49, %50 in 1 : vector<32x64xf32>, vector<32x64xf32> -> vector<32x128xf32>
    %c0_24 = arith.constant 0 : index
    %c0_25 = arith.constant 0 : index
    %52 = vector.load %arg8[%c0_24, %c0_25] : memref<32x128xf32, #tpu.memory_space<vmem>>, vector<32x128xf32>
    tpu.vector_store %arg8[%c0_24, %c0_25], %51 {strides = array<i32>} : memref<32x128xf32, #tpu.memory_space<vmem>>, vector<32x128xf32>,
    return
  }
  func.func @transform_0(%arg0: i32) -> (i32, i32) {
    %c0_i32 = arith.constant 0 : i32
    %c0_i32_0 = arith.constant 0 : i32
    return %arg0, %c0_i32 : i32, i32
  }
  func.func @transform_1(%arg0: i32) -> (i32, i32) {
    %c0_i32 = arith.constant 0 : i32
    %c0_i32_0 = arith.constant 0 : i32
    return %arg0, %c0_i32 : i32, i32
  }
  func.func @transform_2(%arg0: i32) -> (i32, i32) {
    %c0_i32 = arith.constant 0 : i32
    %c0_i32_0 = arith.constant 0 : i32
    %c0_i32_1 = arith.constant 0 : i32
    return %c0_i32, %c0_i32_0 : i32, i32
  }
  func.func @transform_3(%arg0: i32) -> (i32, i32) {
    %c0_i32 = arith.constant 0 : i32
    %c0_i32_0 = arith.constant 0 : i32
    %c0_i32_1 = arith.constant 0 : i32
    return %c0_i32, %c0_i32_0 : i32, i32
  }
  func.func @transform_4(%arg0: i32) -> (i32, i32) {
    %c0_i32 = arith.constant 0 : i32
    %c0_i32_0 = arith.constant 0 : i32
    %c0_i32_1 = arith.constant 0 : i32
    return %c0_i32, %c0_i32_0 : i32, i32
  }
  func.func @transform_5(%arg0: i32) -> (i32, i32) {
    %c0_i32 = arith.constant 0 : i32
    %c0_i32_0 = arith.constant 0 : i32
    %c0_i32_1 = arith.constant 0 : i32
    return %c0_i32, %c0_i32_0 : i32, i32
  }
  func.func @transform_6(%arg0: i32) -> (i32, i32, i32) {
    %c0_i32 = arith.constant 0 : i32
    %c0_i32_0 = arith.constant 0 : i32
    %c0_i32_1 = arith.constant 0 : i32
    return %arg0, %c0_i32, %c0_i32_0 : i32, i32, i32
  }
  func.func @transform_7(%arg0: i32) -> (i32, i32) {
    %c0_i32 = arith.constant 0 : i32
    %c0_i32_0 = arith.constant 0 : i32
    return %arg0, %c0_i32 : i32, i32
  }
}

</mosaic_0001>

<llo_original>
// kernel: tile.28
$region0: #{tile.28}
  #allocation0 [shape = 's32[1]{0}', space=sflag, size = 0x4, scoped, tag = 'scoped memory for tile.28']
  %s0 = inlined_call_operand.vmem [shape: f32[64], index: 0, kind: input, shape index: {}]
  %s1 = inlined_call_operand.vmem [shape: f32[32,64], index: 1, kind: output, shape index: {}]
  // Predicated region
  $region2: #{tile.28} parent=0 // pred_check
    _
  $region3: #{tile.28} parent=0 // pred_check_branch
    %3 = sbr.rel (0) target = $region5
  $region4: #{tile.28} parent=0 // pred_region
    _
  $region5: #{tile.28} parent=0 // pred_fallthru
    _
  %v4 = vld [vmem:[%s0] ss:$0 sm:$0xff]
  %5 = vst [vmem:[%s1] sm:$0xff] %v4
  %s6 = scalar_lea.vmem %s1, 8
  %7 = vst [vmem:[%s6] sm:$0xff] %v4
  %s8 = scalar_lea.vmem %s1, 16
  %9 = vst [vmem:[%s8] sm:$0xff] %v4
  %s10 = scalar_lea.vmem %s1, 24
  %11 = vst [vmem:[%s10] sm:$0xff] %v4

// kernel: pillar_feature_net_forward.1
$region0: #{pillar_feature_net_forward.1}
  #allocation0 [shape = 'u32[]', space=smem, size = 0x4, offset = 0x4, fixed_abs, tag = 'smem constant byte address 0x4 - core index']
  #allocation1 [shape = 'u32[72,128]{1,0:T(1,128)}', space=vmem, size = 0x9000, scoped, tag = 'internal scratch']
  %s0 = inlined_call_operand.vmem [shape: f32[128,128], index: 0, kind: input, shape index: {}]
  %s1 = inlined_call_operand.vmem [shape: f32[128,8], index: 1, kind: input, shape index: {}]
  %s2 = inlined_call_operand.vmem [shape: f32[1,2048], index: 2, kind: input, shape index: {}]
  %s3 = inlined_call_operand.vmem [shape: f32[128,8], index: 3, kind: input, shape index: {}]
  %s4 = inlined_call_operand.vmem [shape: f32[128,2048], index: 4, kind: input, shape index: {}]
  %s5 = inlined_call_operand.vmem [shape: f32[8,2048], index: 5, kind: input, shape index: {}]
  %s6 = inlined_call_operand.vmem [shape: f32[4,2,2048], index: 6, kind: output, shape index: {0}]
  %s7 = inlined_call_operand.vmem [shape: f32[128,128], index: 7, kind: output, shape index: {1}]
  %8 = xla_tuple %s6, %s7
  %s9 = sld [smem:[#allocation0]]
  $region65: #{pillar_feature_net_forward.1} parent=0
    _
  %s11 = ssub.s32 1, %s9
  %s12 = scalar_select 0, %s11, %s9
  loop: start=0, step=1, limit=6
  $region2: #{pillar_feature_net_forward.1} parent=0 // loop_pre_header
    _
  $region3: #{pillar_feature_net_forward.1} parent=0 // loop_header
    %s14 = sphi 0, %s18
    %p15 = scmp.ge.s32.totalorder %s14, 6
    %s24 = sphi 0, %s26
    %s27 = sphi 0, %s24
    %s28 = sphi 0, %s27
    %s44 = sphi 0, %s28
    %s50 = sphi 0, %s52
    %s53 = sphi 0, %s50
    %s54 = sphi 0, %s53
    %s70 = sphi 0, %s54
    %s74 = sphi 0, %s74
    %s76 = sphi 0, %s74
    %s77 = sphi 0, %s76
    %s91 = sphi 0, %s77
    %s95 = sphi 0, %s95
    %s97 = sphi 0, %s95
    %s98 = sphi 0, %s97
    %s112 = sphi 0, %s98
    %s116 = sphi 0, %s116
    %s118 = sphi 0, %s116
    %s119 = sphi 0, %s118
    %s133 = sphi 0, %s119
    %s137 = sphi 0, %s137
    %s139 = sphi 0, %s137
    %s140 = sphi 0, %s139
    %s154 = sphi 0, %s140
    %s160 = sphi 0, %s162
    %s163 = sphi 0, %s160
    %s164 = sphi 0, %s163
    %s180 = sphi 0, %s164
    %s186 = sphi 0, %s188
    %s189 = sphi 0, %s186
    %s190 = sphi 0, %s189
    %s206 = sphi 0, %s190
  $region4: #{pillar_feature_net_forward.1} parent=0 // loop_header_branch
    %17 = sbr.rel (%p15) target = $region8
  $region5: #{pillar_feature_net_forward.1} parent=0 // loop_body
    %s19 = ssub.s32 %s14, 1
    %s20 = ssub.s32 %s14, 2
    %s21 = sadd.s32 %s14, 1
    %s22 = ssub.s32 %s14, %s21
    %p23 = scmp.eq.s32.totalorder %s22, 0
    %s25 = sadd.s32 %s24, 1
    %s26 = scalar_select %p23, %s24, %s25
    %p29 = pneg %p23
    %p30 = scmp.eq.s32.totalorder %s14, 3
    %p31 = por %p29, %p30
    %p32 = scmp.ne.s32.totalorder %s24, %s27
    %p33 = scmp.eq.s32.totalorder %s14, 0
    %p34 = por %p32, %p33
    %p35 = scmp.ne.s32.totalorder %s24, %s27
    %p36 = scmp.eq.s32.totalorder %s19, 3
    %p37 = por %p35, %p36
    %p38 = scmp.ne.s32.totalorder %s27, %s28
    %p39 = scmp.eq.s32.totalorder %s19, 0
    %p40 = por %p38, %p39
    %p41 = scmp.ne.s32.totalorder %s27, %s28
    %p42 = scmp.eq.s32.totalorder %s20, 3
    %p43 = por %p41, %p42
    %p45 = scmp.ne.s32.totalorder %s28, %s44
    %p46 = scmp.eq.s32.totalorder %s20, 0
    %p47 = por %p45, %p46
    %s48 = ssub.s32 %s14, %s21
    %p49 = scmp.eq.s32.totalorder %s48, 0
    %s51 = sadd.s32 %s50, 1
    %s52 = scalar_select %p49, %s50, %s51
    %p55 = pneg %p49
    %p56 = scmp.eq.s32.totalorder %s14, 3
    %p57 = por %p55, %p56
    %p58 = scmp.ne.s32.totalorder %s50, %s53
    %p59 = scmp.eq.s32.totalorder %s14, 0
    %p60 = por %p58, %p59
    %p61 = scmp.ne.s32.totalorder %s50, %s53
    %p62 = scmp.eq.s32.totalorder %s19, 3
    %p63 = por %p61, %p62
    %p64 = scmp.ne.s32.totalorder %s53, %s54
    %p65 = scmp.eq.s32.totalorder %s19, 0
    %p66 = por %p64, %p65
    %p67 = scmp.ne.s32.totalorder %s53, %s54
    %p68 = scmp.eq.s32.totalorder %s20, 3
    %p69 = por %p67, %p68
    %p71 = scmp.ne.s32.totalorder %s54, %s70
    %p72 = scmp.eq.s32.totalorder %s20, 0
    %p73 = por %p71, %p72
    %s75 = sadd.s32 %s74, 1
    %p78 = scmp.eq.s32.totalorder %s14, 3
    %p79 = scmp.ne.s32.totalorder %s74, %s76
    %p80 = scmp.eq.s32.totalorder %s14, 0
    %p81 = por %p79, %p80
    %p82 = scmp.ne.s32.totalorder %s74, %s76
    %p83 = scmp.eq.s32.totalorder %s19, 3
    %p84 = por %p82, %p83
    %p85 = scmp.ne.s32.totalorder %s76, %s77
    %p86 = scmp.eq.s32.totalorder %s19, 0
    %p87 = por %p85, %p86
    %p88 = scmp.ne.s32.totalorder %s76, %s77
    %p89 = scmp.eq.s32.totalorder %s20, 3
    %p90 = por %p88, %p89
    %p92 = scmp.ne.s32.totalorder %s77, %s91
    %p93 = scmp.eq.s32.totalorder %s20, 0
    %p94 = por %p92, %p93
    %s96 = sadd.s32 %s95, 1
    %p99 = scmp.eq.s32.totalorder %s14, 3
    %p100 = scmp.ne.s32.totalorder %s95, %s97
    %p101 = scmp.eq.s32.totalorder %s14, 0
    %p102 = por %p100, %p101
    %p103 = scmp.ne.s32.totalorder %s95, %s97
    %p104 = scmp.eq.s32.totalorder %s19, 3
    %p105 = por %p103, %p104
    %p106 = scmp.ne.s32.totalorder %s97, %s98
    %p107 = scmp.eq.s32.totalorder %s19, 0
    %p108 = por %p106, %p107
    %p109 = scmp.ne.s32.totalorder %s97, %s98
    %p110 = scmp.eq.s32.totalorder %s20, 3
    %p111 = por %p109, %p110
    %p113 = scmp.ne.s32.totalorder %s98, %s112
    %p114 = scmp.eq.s32.totalorder %s20, 0
    %p115 = por %p113, %p114
    %s117 = sadd.s32 %s116, 1
    %p120 = scmp.eq.s32.totalorder %s14, 3
    %p121 = scmp.ne.s32.totalorder %s116, %s118
    %p122 = scmp.eq.s32.totalorder %s14, 0
    %p123 = por %p121, %p122
    %p124 = scmp.ne.s32.totalorder %s116, %s118
    %p125 = scmp.eq.s32.totalorder %s19, 3
    %p126 = por %p124, %p125
    %p127 = scmp.ne.s32.totalorder %s118, %s119
    %p128 = scmp.eq.s32.totalorder %s19, 0
    %p129 = por %p127, %p128
    %p130 = scmp.ne.s32.totalorder %s118, %s119
    %p131 = scmp.eq.s32.totalorder %s20, 3
    %p132 = por %p130, %p131
    %p134 = scmp.ne.s32.totalorder %s119, %s133
    %p135 = scmp.eq.s32.totalorder %s20, 0
    %p136 = por %p134, %p135
    %s138 = sadd.s32 %s137, 1
    %p141 = scmp.eq.s32.totalorder %s14, 3
    %p142 = scmp.ne.s32.totalorder %s137, %s139
    %p143 = scmp.eq.s32.totalorder %s14, 0
    %p144 = por %p142, %p143
    %p145 = scmp.ne.s32.totalorder %s137, %s139
    %p146 = scmp.eq.s32.totalorder %s19, 3
    %p147 = por %p145, %p146
    %p148 = scmp.ne.s32.totalorder %s139, %s140
    %p149 = scmp.eq.s32.totalorder %s19, 0
    %p150 = por %p148, %p149
    %p151 = scmp.ne.s32.totalorder %s139, %s140
    %p152 = scmp.eq.s32.totalorder %s20, 3
    %p153 = por %p151, %p152
    %p155 = scmp.ne.s32.totalorder %s140, %s154
    %p156 = scmp.eq.s32.totalorder %s20, 0
    %p157 = por %p155, %p156
    %s158 = ssub.s32 %s14, %s21
    %p159 = scmp.eq.s32.totalorder %s158, 0
    %s161 = sadd.s32 %s160, 1
    %s162 = scalar_select %p159, %s160, %s161
    %p165 = pneg %p159
    %p166 = scmp.eq.s32.totalorder %s14, 3
    %p167 = por %p165, %p166
    %p168 = scmp.ne.s32.totalorder %s160, %s163
    %p169 = scmp.eq.s32.totalorder %s14, 0
    %p170 = por %p168, %p169
    %p171 = scmp.ne.s32.totalorder %s160, %s163
    %p172 = scmp.eq.s32.totalorder %s19, 3
    %p173 = por %p171, %p172
    %p174 = scmp.ne.s32.totalorder %s163, %s164
    %p175 = scmp.eq.s32.totalorder %s19, 0
    %p176 = por %p174, %p175
    %p177 = scmp.ne.s32.totalorder %s163, %s164
    %p178 = scmp.eq.s32.totalorder %s20, 3
    %p179 = por %p177, %p178
    %p181 = scmp.ne.s32.totalorder %s164, %s180
    %p182 = scmp.eq.s32.totalorder %s20, 0
    %p183 = por %p181, %p182
    %s184 = ssub.s32 %s14, %s21
    %p185 = scmp.eq.s32.totalorder %s184, 0
    %s187 = sadd.s32 %s186, 1
    %s188 = scalar_select %p185, %s186, %s187
    %p191 = pneg %p185
    %p192 = scmp.eq.s32.totalorder %s14, 3
    %p193 = por %p191, %p192
    %p194 = scmp.ne.s32.totalorder %s186, %s189
    %p195 = scmp.eq.s32.totalorder %s14, 0
    %p196 = por %p194, %p195
    %p197 = scmp.ne.s32.totalorder %s186, %s189
    %p198 = scmp.eq.s32.totalorder %s19, 3
    %p199 = por %p197, %p198
    %p200 = scmp.ne.s32.totalorder %s189, %s190
    %p201 = scmp.eq.s32.totalorder %s19, 0
    %p202 = por %p200, %p201
    %p203 = scmp.ne.s32.totalorder %s189, %s190
    %p204 = scmp.eq.s32.totalorder %s20, 3
    %p205 = por %p203, %p204
    %p207 = scmp.ne.s32.totalorder %s190, %s206
    %p208 = scmp.eq.s32.totalorder %s20, 0
    %p209 = por %p207, %p208
    %p210 = scmp.le.s32.totalorder 1, %s14
    %p211 = scmp.lt.s32.totalorder %s14, 5
    %p212 = pnand %p210, %p211
    %p213 = pneg %p212
    // Predicated region
    $region9: #{pillar_feature_net_forward.1} parent=5 // pred_check
      _
    $region10: #{pillar_feature_net_forward.1} parent=5 // pred_check_branch
      %215 = sbr.rel (%p212) target = $region12
    $region11: #{pillar_feature_net_forward.1} parent=5 // pred_region
      %s216 = ssub.s32 %s14, 1
      // Predicated region
      $region13: #{pillar_feature_net_forward.1} parent=11 // pred_check
        %p217 = pneg %p87
      $region14: #{pillar_feature_net_forward.1} parent=11 // pred_check_branch
        %219 = sbr.rel (%p217) target = $region16
      $region15: #{pillar_feature_net_forward.1} parent=11 // pred_region
        _
      $region16: #{pillar_feature_net_forward.1} parent=11 // pred_fallthru
        _
      // Predicated region
      $region17: #{pillar_feature_net_forward.1} parent=11 // pred_check
        %p220 = pneg %p108
      $region18: #{pillar_feature_net_forward.1} parent=11 // pred_check_branch
        %222 = sbr.rel (%p220) target = $region20
      $region19: #{pillar_feature_net_forward.1} parent=11 // pred_region
        _
      $region20: #{pillar_feature_net_forward.1} parent=11 // pred_fallthru
        _
      // Predicated region
      $region21: #{pillar_feature_net_forward.1} parent=11 // pred_check
        %p223 = pneg %p129
      $region22: #{pillar_feature_net_forward.1} parent=11 // pred_check_branch
        %225 = sbr.rel (%p223) target = $region24
      $region23: #{pillar_feature_net_forward.1} parent=11 // pred_region
        _
      $region24: #{pillar_feature_net_forward.1} parent=11 // pred_fallthru
        _
      // Predicated region
      $region25: #{pillar_feature_net_forward.1} parent=11 // pred_check
        %p226 = pneg %p150
      $region26: #{pillar_feature_net_forward.1} parent=11 // pred_check_branch
        %228 = sbr.rel (%p226) target = $region28
      $region27: #{pillar_feature_net_forward.1} parent=11 // pred_region
        _
      $region28: #{pillar_feature_net_forward.1} parent=11 // pred_fallthru
        _
    $region12: #{pillar_feature_net_forward.1} parent=5 // pred_fallthru
      _
    %p229 = scmp.lt.s32.totalorder %s14, 4
    // Predicated region
    $region29: #{pillar_feature_net_forward.1} parent=5 // pred_check
      %p230 = pneg %p229
    $region30: #{pillar_feature_net_forward.1} parent=5 // pred_check_branch
      %232 = sbr.rel (%p230) target = $region32
    $region31: #{pillar_feature_net_forward.1} parent=5 // pred_region
      // Predicated region
      $region33: #{pillar_feature_net_forward.1} parent=31 // pred_check
        %p233 = pneg %p34
      $region34: #{pillar_feature_net_forward.1} parent=31 // pred_check_branch
        %235 = sbr.rel (%p233) target = $region36
      $region35: #{pillar_feature_net_forward.1} parent=31 // pred_region
        %s236 = smul.u32 4, %s14
        %p237 = scmp.lt.s32.totalorder %s236, 15
        %s238 = scalar_select %p237, %s236, 15
        %s239 = smul.addr %s238, 8
        %s240 = scalar_lea.vmem %s0, %s239
        %s241 = smul.u32 4, %s14
      $region36: #{pillar_feature_net_forward.1} parent=31 // pred_fallthru
        _
      // Predicated region
      $region37: #{pillar_feature_net_forward.1} parent=31 // pred_check
        %p242 = pneg %p60
      $region38: #{pillar_feature_net_forward.1} parent=31 // pred_check_branch
        %244 = sbr.rel (%p242) target = $region40
      $region39: #{pillar_feature_net_forward.1} parent=31 // pred_region
        %s245 = smul.u32 4, %s14
        %p246 = scmp.lt.s32.totalorder %s245, 15
        %s247 = scalar_select %p246, %s245, 15
        %s248 = smul.addr %s247, 8
        %s249 = scalar_lea.vmem %s1, %s248
        %s250 = smul.u32 4, %s14
      $region40: #{pillar_feature_net_forward.1} parent=31 // pred_fallthru
        _
    $region32: #{pillar_feature_net_forward.1} parent=5 // pred_fallthru
      _
    %p251 = scmp.le.s32.totalorder 1, %s14
    %p252 = scmp.lt.s32.totalorder %s14, 5
    %p253 = pnand %p251, %p252
    %p254 = pneg %p253
    // Predicated region
    $region41: #{pillar_feature_net_forward.1} parent=5 // pred_check
      _
    $region42: #{pillar_feature_net_forward.1} parent=5 // pred_check_branch
      %256 = sbr.rel (%p253) target = $region44
    $region43: #{pillar_feature_net_forward.1} parent=5 // pred_region
      %s257 = ssub.s32 %s14, 1
      %s258 = smul.u32 4, %s19
      %p259 = scmp.lt.s32.totalorder %s258, 15
      %s260 = scalar_select %p259, %s258, 15
      %s261 = smul.addr %s260, 8
      %s262 = scalar_lea.vmem %s0, %s261
      %p263 = pneg %p40
      %p264 = pneg %p37
      %s265 = smul.u32 4, %s19
      %p266 = scmp.lt.s32.totalorder %s265, 15
      %s267 = scalar_select %p266, %s265, 15
      %s268 = smul.addr %s267, 8
      %s269 = scalar_lea.vmem %s1, %s268
      %p270 = pneg %p66
      %p271 = pneg %p63
      %p272 = pneg %p87
      %p273 = pneg %p84
      %p274 = pneg %p108
      %p275 = pneg %p105
      %p276 = pneg %p129
      %p277 = pneg %p126
      %p278 = pneg %p150
      %p279 = pneg %p147
      %p280 = pneg %p176
      %p281 = pneg %p173
      %p282 = scmp.lt.s32.totalorder %s19, 3
      %s283 = scalar_select %p282, %s19, 3
      %s284 = smul.addr %s283, 16
      %s285 = smul.addr %s284, 2
      %s286 = scalar_lea.vmem %s6, %s285
      %p287 = pneg %p202
      %p288 = pneg %p199
      %s289 = smul.u32 4, %s19
      %p290 = scmp.lt.s32.totalorder %s289, 15
      %s291 = scalar_select %p290, %s289, 15
      %s292 = smul.addr %s291, 8
      %s293 = scalar_lea.vmem %s7, %s292
      %s294 = smul.u32 4, %s19
      %p295 = scmp.lt.s32.totalorder %s294, 15
      %s296 = scalar_select %p295, %s294, 15
      %s297 = smul.addr %s296, 8
      %s298 = scalar_lea.vmem %s0, %s297
      %s299 = smul.u32 4, %s19
      %s300 = smul.u32 4, %s19
      %p301 = scmp.lt.s32.totalorder %s300, 15
      %s302 = scalar_select %p301, %s300, 15
      %s303 = smul.addr %s302, 8
      %s304 = scalar_lea.vmem %s1, %s303
      %s305 = smul.u32 4, %s19
      %p306 = scmp.lt.s32.totalorder %s19, 3
      %s307 = scalar_select %p306, %s19, 3
      %s308 = smul.addr %s307, 16
      %s309 = smul.addr %s308, 2
      %s310 = scalar_lea.vmem %s6, %s309
      %s311 = smul.u32 4, %s19
      %p312 = scmp.lt.s32.totalorder %s311, 15
      %s313 = scalar_select %p312, %s311, 15
      %s314 = smul.addr %s313, 8
      %s315 = scalar_lea.vmem %s7, %s314
      %s316 = smul.u32 4, %s19
      %v317 = vld [vmem:[%s298] sm:$0xff]
      %v318 = vld [vmem:[%s298 + $0x8] sm:$0xff]
      %v319 = vld [vmem:[%s298 + $0x10] sm:$0xff]
      %v320 = vld [vmem:[%s298 + $0x18] sm:$0xff]
      %v321 = vld [vmem:[%s304] sm:$0xff]
      %v322 = vld [vmem:[%s304 + $0x8] sm:$0xff]
      %v323 = vld [vmem:[%s304 + $0x10] sm:$0xff]
      %v324 = vld [vmem:[%s304 + $0x18] sm:$0xff]
      %v325 = vld [vmem:[%s4] sm:$0xff]
      %v326 = vld [vmem:[%s4 + $0x8] sm:$0xff]
      %v327 = vld [vmem:[%s4 + $0x10] sm:$0xff]
      %v328 = vld [vmem:[%s4 + $0x18] sm:$0xff]
      %v329 = vld [vmem:[%s4 + $0x20] sm:$0xff]
      %v330 = vld [vmem:[%s4 + $0x28] sm:$0xff]
      %v331 = vld [vmem:[%s4 + $0x30] sm:$0xff]
      %v332 = vld [vmem:[%s4 + $0x38] sm:$0xff]
      %v333 = vld [vmem:[%s4 + $0x40] sm:$0xff]
      %v334 = vld [vmem:[%s4 + $0x48] sm:$0xff]
      %v335 = vld [vmem:[%s4 + $0x50] sm:$0xff]
      %v336 = vld [vmem:[%s4 + $0x58] sm:$0xff]
      %v337 = vld [vmem:[%s4 + $0x60] sm:$0xff]
      %v338 = vld [vmem:[%s4 + $0x68] sm:$0xff]
      %v339 = vld [vmem:[%s4 + $0x70] sm:$0xff]
      %v340 = vld [vmem:[%s4 + $0x78] sm:$0xff]
      %v341 = vld [vmem:[%s4 + $0x80] sm:$0xff]
      %v342 = vld [vmem:[%s4 + $0x88] sm:$0xff]
      %v343 = vld [vmem:[%s4 + $0x90] sm:$0xff]
      %v344 = vld [vmem:[%s4 + $0x98] sm:$0xff]
      %v345 = vld [vmem:[%s4 + $0xa0] sm:$0xff]
      %v346 = vld [vmem:[%s4 + $0xa8] sm:$0xff]
      %v347 = vld [vmem:[%s4 + $0xb0] sm:$0xff]
      %v348 = vld [vmem:[%s4 + $0xb8] sm:$0xff]
      %v349 = vld [vmem:[%s4 + $0xc0] sm:$0xff]
      %v350 = vld [vmem:[%s4 + $0xc8] sm:$0xff]
      %v351 = vld [vmem:[%s4 + $0xd0] sm:$0xff]
      %v352 = vld [vmem:[%s4 + $0xd8] sm:$0xff]
      %v353 = vld [vmem:[%s4 + $0xe0] sm:$0xff]
      %v354 = vld [vmem:[%s4 + $0xe8] sm:$0xff]
      %v355 = vld [vmem:[%s4 + $0xf0] sm:$0xff]
      %v356 = vld [vmem:[%s4 + $0xf8] sm:$0xff]
      %v357 = vld [vmem:[%s4 + $0x100] sm:$0xff]
      %v358 = vld [vmem:[%s4 + $0x108] sm:$0xff]
      %v359 = vld [vmem:[%s4 + $0x110] sm:$0xff]
      %v360 = vld [vmem:[%s4 + $0x118] sm:$0xff]
      %v361 = vld [vmem:[%s4 + $0x120] sm:$0xff]
      %v362 = vld [vmem:[%s4 + $0x128] sm:$0xff]
      %v363 = vld [vmem:[%s4 + $0x130] sm:$0xff]
      %v364 = vld [vmem:[%s4 + $0x138] sm:$0xff]
      %v365 = vld [vmem:[%s4 + $0x140] sm:$0xff]
      %v366 = vld [vmem:[%s4 + $0x148] sm:$0xff]
      %v367 = vld [vmem:[%s4 + $0x150] sm:$0xff]
      %v368 = vld [vmem:[%s4 + $0x158] sm:$0xff]
      %v369 = vld [vmem:[%s4 + $0x160] sm:$0xff]
      %v370 = vld [vmem:[%s4 + $0x168] sm:$0xff]
      %v371 = vld [vmem:[%s4 + $0x170] sm:$0xff]
      %v372 = vld [vmem:[%s4 + $0x178] sm:$0xff]
      %v373 = vld [vmem:[%s4 + $0x180] sm:$0xff]
      %v374 = vld [vmem:[%s4 + $0x188] sm:$0xff]
      %v375 = vld [vmem:[%s4 + $0x190] sm:$0xff]
      %v376 = vld [vmem:[%s4 + $0x198] sm:$0xff]
      %v377 = vld [vmem:[%s4 + $0x1a0] sm:$0xff]
      %v378 = vld [vmem:[%s4 + $0x1a8] sm:$0xff]
      %v379 = vld [vmem:[%s4 + $0x1b0] sm:$0xff]
      %v380 = vld [vmem:[%s4 + $0x1b8] sm:$0xff]
      %v381 = vld [vmem:[%s4 + $0x1c0] sm:$0xff]
      %v382 = vld [vmem:[%s4 + $0x1c8] sm:$0xff]
      %v383 = vld [vmem:[%s4 + $0x1d0] sm:$0xff]
      %v384 = vld [vmem:[%s4 + $0x1d8] sm:$0xff]
      %v385 = vld [vmem:[%s4 + $0x1e0] sm:$0xff]
      %v386 = vld [vmem:[%s4 + $0x1e8] sm:$0xff]
      %v387 = vld [vmem:[%s4 + $0x1f0] sm:$0xff]
      %v388 = vld [vmem:[%s4 + $0x1f8] sm:$0xff]
      %v389 = vld [vmem:[%s4 + $0x200] sm:$0xff]
      %v390 = vld [vmem:[%s4 + $0x208] sm:$0xff]
      %v391 = vld [vmem:[%s4 + $0x210] sm:$0xff]
      %v392 = vld [vmem:[%s4 + $0x218] sm:$0xff]
      %v393 = vld [vmem:[%s4 + $0x220] sm:$0xff]
      %v394 = vld [vmem:[%s4 + $0x228] sm:$0xff]
      %v395 = vld [vmem:[%s4 + $0x230] sm:$0xff]
      %v396 = vld [vmem:[%s4 + $0x238] sm:$0xff]
      %v397 = vld [vmem:[%s4 + $0x240] sm:$0xff]
      %v398 = vld [vmem:[%s4 + $0x248] sm:$0xff]
      %v399 = vld [vmem:[%s4 + $0x250] sm:$0xff]
      %v400 = vld [vmem:[%s4 + $0x258] sm:$0xff]
      %v401 = vld [vmem:[%s4 + $0x260] sm:$0xff]
      %v402 = vld [vmem:[%s4 + $0x268] sm:$0xff]
      %v403 = vld [vmem:[%s4 + $0x270] sm:$0xff]
      %v404 = vld [vmem:[%s4 + $0x278] sm:$0xff]
      %v405 = vld [vmem:[%s4 + $0x280] sm:$0xff]
      %v406 = vld [vmem:[%s4 + $0x288] sm:$0xff]
      %v407 = vld [vmem:[%s4 + $0x290] sm:$0xff]
      %v408 = vld [vmem:[%s4 + $0x298] sm:$0xff]
      %v409 = vld [vmem:[%s4 + $0x2a0] sm:$0xff]
      %v410 = vld [vmem:[%s4 + $0x2a8] sm:$0xff]
      %v411 = vld [vmem:[%s4 + $0x2b0] sm:$0xff]
      %v412 = vld [vmem:[%s4 + $0x2b8] sm:$0xff]
      %v413 = vld [vmem:[%s4 + $0x2c0] sm:$0xff]
      %v414 = vld [vmem:[%s4 + $0x2c8] sm:$0xff]
      %v415 = vld [vmem:[%s4 + $0x2d0] sm:$0xff]
      %v416 = vld [vmem:[%s4 + $0x2d8] sm:$0xff]
      %v417 = vld [vmem:[%s4 + $0x2e0] sm:$0xff]
      %v418 = vld [vmem:[%s4 + $0x2e8] sm:$0xff]
      %v419 = vld [vmem:[%s4 + $0x2f0] sm:$0xff]
      %v420 = vld [vmem:[%s4 + $0x2f8] sm:$0xff]
      %v421 = vld [vmem:[%s4 + $0x300] sm:$0xff]
      %v422 = vld [vmem:[%s4 + $0x308] sm:$0xff]
      %v423 = vld [vmem:[%s4 + $0x310] sm:$0xff]
      %v424 = vld [vmem:[%s4 + $0x318] sm:$0xff]
      %v425 = vld [vmem:[%s4 + $0x320] sm:$0xff]
      %v426 = vld [vmem:[%s4 + $0x328] sm:$0xff]
      %v427 = vld [vmem:[%s4 + $0x330] sm:$0xff]
      %v428 = vld [vmem:[%s4 + $0x338] sm:$0xff]
      %v429 = vld [vmem:[%s4 + $0x340] sm:$0xff]
      %v430 = vld [vmem:[%s4 + $0x348] sm:$0xff]
      %v431 = vld [vmem:[%s4 + $0x350] sm:$0xff]
      %v432 = vld [vmem:[%s4 + $0x358] sm:$0xff]
      %v433 = vld [vmem:[%s4 + $0x360] sm:$0xff]
      %v434 = vld [vmem:[%s4 + $0x368] sm:$0xff]
      %v435 = vld [vmem:[%s4 + $0x370] sm:$0xff]
      %v436 = vld [vmem:[%s4 + $0x378] sm:$0xff]
      %v437 = vld [vmem:[%s4 + $0x380] sm:$0xff]
      %v438 = vld [vmem:[%s4 + $0x388] sm:$0xff]
      %v439 = vld [vmem:[%s4 + $0x390] sm:$0xff]
      %v440 = vld [vmem:[%s4 + $0x398] sm:$0xff]
      %v441 = vld [vmem:[%s4 + $0x3a0] sm:$0xff]
      %v442 = vld [vmem:[%s4 + $0x3a8] sm:$0xff]
      %v443 = vld [vmem:[%s4 + $0x3b0] sm:$0xff]
      %v444 = vld [vmem:[%s4 + $0x3b8] sm:$0xff]
      %v445 = vld [vmem:[%s4 + $0x3c0] sm:$0xff]
      %v446 = vld [vmem:[%s4 + $0x3c8] sm:$0xff]
      %v447 = vld [vmem:[%s4 + $0x3d0] sm:$0xff]
      %v448 = vld [vmem:[%s4 + $0x3d8] sm:$0xff]
      %v449 = vld [vmem:[%s4 + $0x3e0] sm:$0xff]
      %v450 = vld [vmem:[%s4 + $0x3e8] sm:$0xff]
      %v451 = vld [vmem:[%s4 + $0x3f0] sm:$0xff]
      %v452 = vld [vmem:[%s4 + $0x3f8] sm:$0xff]
      %v453 = vld [vmem:[%s4 + $0x400] sm:$0xff]
      %v454 = vld [vmem:[%s4 + $0x408] sm:$0xff]
      %v455 = vld [vmem:[%s4 + $0x410] sm:$0xff]
      %v456 = vld [vmem:[%s4 + $0x418] sm:$0xff]
      %v457 = vld [vmem:[%s4 + $0x420] sm:$0xff]
      %v458 = vld [vmem:[%s4 + $0x428] sm:$0xff]
      %v459 = vld [vmem:[%s4 + $0x430] sm:$0xff]
      %v460 = vld [vmem:[%s4 + $0x438] sm:$0xff]
      %v461 = vld [vmem:[%s4 + $0x440] sm:$0xff]
      %v462 = vld [vmem:[%s4 + $0x448] sm:$0xff]
      %v463 = vld [vmem:[%s4 + $0x450] sm:$0xff]
      %v464 = vld [vmem:[%s4 + $0x458] sm:$0xff]
      %v465 = vld [vmem:[%s4 + $0x460] sm:$0xff]
      %v466 = vld [vmem:[%s4 + $0x468] sm:$0xff]
      %v467 = vld [vmem:[%s4 + $0x470] sm:$0xff]
      %v468 = vld [vmem:[%s4 + $0x478] sm:$0xff]
      %v469 = vld [vmem:[%s4 + $0x480] sm:$0xff]
      %v470 = vld [vmem:[%s4 + $0x488] sm:$0xff]
      %v471 = vld [vmem:[%s4 + $0x490] sm:$0xff]
      %v472 = vld [vmem:[%s4 + $0x498] sm:$0xff]
      %v473 = vld [vmem:[%s4 + $0x4a0] sm:$0xff]
      %v474 = vld [vmem:[%s4 + $0x4a8] sm:$0xff]
      %v475 = vld [vmem:[%s4 + $0x4b0] sm:$0xff]
      %v476 = vld [vmem:[%s4 + $0x4b8] sm:$0xff]
      %v477 = vld [vmem:[%s4 + $0x4c0] sm:$0xff]
      %v478 = vld [vmem:[%s4 + $0x4c8] sm:$0xff]
      %v479 = vld [vmem:[%s4 + $0x4d0] sm:$0xff]
      %v480 = vld [vmem:[%s4 + $0x4d8] sm:$0xff]
      %v481 = vld [vmem:[%s4 + $0x4e0] sm:$0xff]
      %v482 = vld [vmem:[%s4 + $0x4e8] sm:$0xff]
      %v483 = vld [vmem:[%s4 + $0x4f0] sm:$0xff]
      %v484 = vld [vmem:[%s4 + $0x4f8] sm:$0xff]
      %v485 = vld [vmem:[%s4 + $0x500] sm:$0xff]
      %v486 = vld [vmem:[%s4 + $0x508] sm:$0xff]
      %v487 = vld [vmem:[%s4 + $0x510] sm:$0xff]
      %v488 = vld [vmem:[%s4 + $0x518] sm:$0xff]
      %v489 = vld [vmem:[%s4 + $0x520] sm:$0xff]
      %v490 = vld [vmem:[%s4 + $0x528] sm:$0xff]
      %v491 = vld [vmem:[%s4 + $0x530] sm:$0xff]
      %v492 = vld [vmem:[%s4 + $0x538] sm:$0xff]
      %v493 = vld [vmem:[%s4 + $0x540] sm:$0xff]
      %v494 = vld [vmem:[%s4 + $0x548] sm:$0xff]
      %v495 = vld [vmem:[%s4 + $0x550] sm:$0xff]
      %v496 = vld [vmem:[%s4 + $0x558] sm:$0xff]
      %v497 = vld [vmem:[%s4 + $0x560] sm:$0xff]
      %v498 = vld [vmem:[%s4 + $0x568] sm:$0xff]
      %v499 = vld [vmem:[%s4 + $0x570] sm:$0xff]
      %v500 = vld [vmem:[%s4 + $0x578] sm:$0xff]
      %v501 = vld [vmem:[%s4 + $0x580] sm:$0xff]
      %v502 = vld [vmem:[%s4 + $0x588] sm:$0xff]
      %v503 = vld [vmem:[%s4 + $0x590] sm:$0xff]
      %v504 = vld [vmem:[%s4 + $0x598] sm:$0xff]
      %v505 = vld [vmem:[%s4 + $0x5a0] sm:$0xff]
      %v506 = vld [vmem:[%s4 + $0x5a8] sm:$0xff]
      %v507 = vld [vmem:[%s4 + $0x5b0] sm:$0xff]
      %v508 = vld [vmem:[%s4 + $0x5b8] sm:$0xff]
      %v509 = vld [vmem:[%s4 + $0x5c0] sm:$0xff]
      %v510 = vld [vmem:[%s4 + $0x5c8] sm:$0xff]
      %v511 = vld [vmem:[%s4 + $0x5d0] sm:$0xff]
      %v512 = vld [vmem:[%s4 + $0x5d8] sm:$0xff]
      %v513 = vld [vmem:[%s4 + $0x5e0] sm:$0xff]
      %v514 = vld [vmem:[%s4 + $0x5e8] sm:$0xff]
      %v515 = vld [vmem:[%s4 + $0x5f0] sm:$0xff]
      %v516 = vld [vmem:[%s4 + $0x5f8] sm:$0xff]
      %v517 = vld [vmem:[%s4 + $0x600] sm:$0xff]
      %v518 = vld [vmem:[%s4 + $0x608] sm:$0xff]
      %v519 = vld [vmem:[%s4 + $0x610] sm:$0xff]
      %v520 = vld [vmem:[%s4 + $0x618] sm:$0xff]
      %v521 = vld [vmem:[%s4 + $0x620] sm:$0xff]
      %v522 = vld [vmem:[%s4 + $0x628] sm:$0xff]
      %v523 = vld [vmem:[%s4 + $0x630] sm:$0xff]
      %v524 = vld [vmem:[%s4 + $0x638] sm:$0xff]
      %v525 = vld [vmem:[%s4 + $0x640] sm:$0xff]
      %v526 = vld [vmem:[%s4 + $0x648] sm:$0xff]
      %v527 = vld [vmem:[%s4 + $0x650] sm:$0xff]
      %v528 = vld [vmem:[%s4 + $0x658] sm:$0xff]
      %v529 = vld [vmem:[%s4 + $0x660] sm:$0xff]
      %v530 = vld [vmem:[%s4 + $0x668] sm:$0xff]
      %v531 = vld [vmem:[%s4 + $0x670] sm:$0xff]
      %v532 = vld [vmem:[%s4 + $0x678] sm:$0xff]
      %v533 = vld [vmem:[%s4 + $0x680] sm:$0xff]
      %v534 = vld [vmem:[%s4 + $0x688] sm:$0xff]
      %v535 = vld [vmem:[%s4 + $0x690] sm:$0xff]
      %v536 = vld [vmem:[%s4 + $0x698] sm:$0xff]
      %v537 = vld [vmem:[%s4 + $0x6a0] sm:$0xff]
      %v538 = vld [vmem:[%s4 + $0x6a8] sm:$0xff]
      %v539 = vld [vmem:[%s4 + $0x6b0] sm:$0xff]
      %v540 = vld [vmem:[%s4 + $0x6b8] sm:$0xff]
      %v541 = vld [vmem:[%s4 + $0x6c0] sm:$0xff]
      %v542 = vld [vmem:[%s4 + $0x6c8] sm:$0xff]
      %v543 = vld [vmem:[%s4 + $0x6d0] sm:$0xff]
      %v544 = vld [vmem:[%s4 + $0x6d8] sm:$0xff]
      %v545 = vld [vmem:[%s4 + $0x6e0] sm:$0xff]
      %v546 = vld [vmem:[%s4 + $0x6e8] sm:$0xff]
      %v547 = vld [vmem:[%s4 + $0x6f0] sm:$0xff]
      %v548 = vld [vmem:[%s4 + $0x6f8] sm:$0xff]
      %v549 = vld [vmem:[%s4 + $0x700] sm:$0xff]
      %v550 = vld [vmem:[%s4 + $0x708] sm:$0xff]
      %v551 = vld [vmem:[%s4 + $0x710] sm:$0xff]
      %v552 = vld [vmem:[%s4 + $0x718] sm:$0xff]
      %v553 = vld [vmem:[%s4 + $0x720] sm:$0xff]
      %v554 = vld [vmem:[%s4 + $0x728] sm:$0xff]
      %v555 = vld [vmem:[%s4 + $0x730] sm:$0xff]
      %v556 = vld [vmem:[%s4 + $0x738] sm:$0xff]
      %v557 = vld [vmem:[%s4 + $0x740] sm:$0xff]
      %v558 = vld [vmem:[%s4 + $0x748] sm:$0xff]
      %v559 = vld [vmem:[%s4 + $0x750] sm:$0xff]
      %v560 = vld [vmem:[%s4 + $0x758] sm:$0xff]
      %v561 = vld [vmem:[%s4 + $0x760] sm:$0xff]
      %v562 = vld [vmem:[%s4 + $0x768] sm:$0xff]
      %v563 = vld [vmem:[%s4 + $0x770] sm:$0xff]
      %v564 = vld [vmem:[%s4 + $0x778] sm:$0xff]
      %v565 = vld [vmem:[%s4 + $0x780] sm:$0xff]
      %v566 = vld [vmem:[%s4 + $0x788] sm:$0xff]
      %v567 = vld [vmem:[%s4 + $0x790] sm:$0xff]
      %v568 = vld [vmem:[%s4 + $0x798] sm:$0xff]
      %v569 = vld [vmem:[%s4 + $0x7a0] sm:$0xff]
      %v570 = vld [vmem:[%s4 + $0x7a8] sm:$0xff]
      %v571 = vld [vmem:[%s4 + $0x7b0] sm:$0xff]
      %v572 = vld [vmem:[%s4 + $0x7b8] sm:$0xff]
      %v573 = vld [vmem:[%s4 + $0x7c0] sm:$0xff]
      %v574 = vld [vmem:[%s4 + $0x7c8] sm:$0xff]
      %v575 = vld [vmem:[%s4 + $0x7d0] sm:$0xff]
      %v576 = vld [vmem:[%s4 + $0x7d8] sm:$0xff]
      %v577 = vld [vmem:[%s4 + $0x7e0] sm:$0xff]
      %v578 = vld [vmem:[%s4 + $0x7e8] sm:$0xff]
      %v579 = vld [vmem:[%s4 + $0x7f0] sm:$0xff]
      %v580 = vld [vmem:[%s4 + $0x7f8] sm:$0xff]
      %v581 = vld [vmem:[%s3] sm:$0xff]
      %v582 = vld [vmem:[%s3 + $0x8] sm:$0xff]
      %v583 = vld [vmem:[%s3 + $0x10] sm:$0xff]
      %v584 = vld [vmem:[%s3 + $0x18] sm:$0xff]
      %v585 = vld [vmem:[%s3 + $0x20] sm:$0xff]
      %v586 = vld [vmem:[%s3 + $0x28] sm:$0xff]
      %v587 = vld [vmem:[%s3 + $0x30] sm:$0xff]
      %v588 = vld [vmem:[%s3 + $0x38] sm:$0xff]
      %v589 = vld [vmem:[%s3 + $0x40] sm:$0xff]
      %v590 = vld [vmem:[%s3 + $0x48] sm:$0xff]
      %v591 = vld [vmem:[%s3 + $0x50] sm:$0xff]
      %v592 = vld [vmem:[%s3 + $0x58] sm:$0xff]
      %v593 = vld [vmem:[%s3 + $0x60] sm:$0xff]
      %v594 = vld [vmem:[%s3 + $0x68] sm:$0xff]
      %v595 = vld [vmem:[%s3 + $0x70] sm:$0xff]
      %v596 = vld [vmem:[%s3 + $0x78] sm:$0xff]
      %597 = vmatpush.msra.mxu0 %v596
      %598 = vmatpush.msra.mxu0 %v595
      %599 = vmatpush.msra.mxu0 %v594
      %600 = vmatpush.msra.mxu0 %v593
      %601 = vmatpush.msra.mxu0 %v592
      %602 = vmatpush.msra.mxu0 %v591
      %603 = vmatpush.msra.mxu0 %v590
      %604 = vmatpush.msra.mxu0 %v589
      %605 = vmatpush.msra.mxu0 %v588
      %606 = vmatpush.msra.mxu0 %v587
      %607 = vmatpush.msra.mxu0 %v586
      %608 = vmatpush.msra.mxu0 %v585
      %609 = vmatpush.msra.mxu0 %v584
      %610 = vmatpush.msra.mxu0 %v583
      %611 = vmatpush.msra.mxu0 %v582
      %612 = vmatpush.msra.mxu0 %v581
      %613 = vmatmul.f32.gmra.mxu0 %v317
      %v614 = vpop.f32.mrf.mxu0
      %v615 = vadd.f32 0.0, %v614
      %616 = vmatmul.f32.gmra.mxu0 %v318
      %v617 = vpop.f32.mrf.mxu0
      %v618 = vadd.f32 0.0, %v617
      %619 = vmatmul.f32.gmra.mxu0 %v319
      %v620 = vpop.f32.mrf.mxu0
      %v621 = vadd.f32 0.0, %v620
      %622 = vmatmul.f32.gmra.mxu0 %v320
      %v623 = vpop.f32.mrf.mxu0
      %v624 = vadd.f32 0.0, %v623
      %625 = vdwg.mxu0
      %627 = vset.pattern.permute.xlu0 1
      %628 = vperm.xlu0 %627, %v321
      %v629 = vpop.permute.xlu0 %628
      %632 = vset.pattern.permute.xlu0 1
      %633 = vperm.xlu0 %632, %v322
      %v634 = vpop.permute.xlu0 %633
      %637 = vset.pattern.permute.xlu0 1
      %638 = vperm.xlu0 %637, %v323
      %v639 = vpop.permute.xlu0 %638
      %642 = vset.pattern.permute.xlu0 1
      %643 = vperm.xlu0 %642, %v324
      %v644 = vpop.permute.xlu0 %643
      %v646 = vmul.f32 %v615, %v629
      %v647 = vmul.f32 %v618, %v634
      %v648 = vmul.f32 %v621, %v639
      %v649 = vmul.f32 %v624, %v644
      %v650 = vadd.f32 %v321, %v646
      %v651 = vadd.f32 %v322, %v647
      %v652 = vadd.f32 %v323, %v648
      %v653 = vadd.f32 %v324, %v649
      %v654 = vld [vmem:[%s5] sm:$0xff]
      %v655 = vld [vmem:[%s5 + $0x8] sm:$0xff]
      %v656 = vld [vmem:[%s5 + $0x10] sm:$0xff]
      %v657 = vld [vmem:[%s5 + $0x18] sm:$0xff]
      %v658 = vld [vmem:[%s5 + $0x20] sm:$0xff]
      %v659 = vld [vmem:[%s5 + $0x28] sm:$0xff]
      %v660 = vld [vmem:[%s5 + $0x30] sm:$0xff]
      %v661 = vld [vmem:[%s5 + $0x38] sm:$0xff]
      %v662 = vld [vmem:[%s5 + $0x40] sm:$0xff]
      %v663 = vld [vmem:[%s5 + $0x48] sm:$0xff]
      %v664 = vld [vmem:[%s5 + $0x50] sm:$0xff]
      %v665 = vld [vmem:[%s5 + $0x58] sm:$0xff]
      %v666 = vld [vmem:[%s5 + $0x60] sm:$0xff]
      %v667 = vld [vmem:[%s5 + $0x68] sm:$0xff]
      %v668 = vld [vmem:[%s5 + $0x70] sm:$0xff]
      %v669 = vld [vmem:[%s5 + $0x78] sm:$0xff]
      %vm670 = vcmask 64512
      %v672 = vsel %vm670, %v650, 0
      %v675 = vsel %vm670, %v651, 0
      %v678 = vsel %vm670, %v652, 0
      %v681 = vsel %vm670, %v653, 0
      %683 = vmatpush.msra.mxu0 0.0
      %684 = vmatpush.msra.mxu0 0.0
      %685 = vmatpush.msra.mxu0 0.0
      %686 = vmatpush.msra.mxu0 0.0
      %687 = vmatpush.msra.mxu0 0.0
      %688 = vmatpush.msra.mxu0 0.0
      %689 = vmatpush.msra.mxu0 0.0
      %690 = vmatpush.msra.mxu0 0.0
      %691 = vmatpush.msra.mxu0 0.0
      %692 = vmatpush.msra.mxu0 0.0
      %693 = vmatpush.msra.mxu0 0.0
      %694 = vmatpush.msra.mxu0 0.0
      %695 = vmatpush.msra.mxu0 0.0
      %696 = vmatpush.msra.mxu0 0.0
      %697 = vmatpush.msra.mxu0 0.0
      %698 = vmatpush.msra.mxu0 %v654
      %699 = vmatmul.f32.gmra.mxu0 %v672
      %v700 = vpop.f32.mrf.mxu0
      %v701 = vadd.f32 0.0, %v700
      %702 = vmatmul.f32.gmra.mxu0 %v675
      %v703 = vpop.f32.mrf.mxu0
      %v704 = vadd.f32 0.0, %v703
      %705 = vmatmul.f32.gmra.mxu0 %v678
      %v706 = vpop.f32.mrf.mxu0
      %v707 = vadd.f32 0.0, %v706
      %708 = vmatmul.f32.gmra.mxu0 %v681
      %v709 = vpop.f32.mrf.mxu0
      %v710 = vadd.f32 0.0, %v709
      %711 = vdwg.mxu0
      %712 = vmatpush.msra.mxu0 0.0
      %713 = vmatpush.msra.mxu0 0.0
      %714 = vmatpush.msra.mxu0 0.0
      %715 = vmatpush.msra.mxu0 0.0
      %716 = vmatpush.msra.mxu0 0.0
      %717 = vmatpush.msra.mxu0 0.0
      %718 = vmatpush.msra.mxu0 0.0
      %719 = vmatpush.msra.mxu0 0.0
      %720 = vmatpush.msra.mxu0 0.0
      %721 = vmatpush.msra.mxu0 0.0
      %722 = vmatpush.msra.mxu0 0.0
      %723 = vmatpush.msra.mxu0 0.0
      %724 = vmatpush.msra.mxu0 0.0
      %725 = vmatpush.msra.mxu0 0.0
      %726 = vmatpush.msra.mxu0 0.0
      %727 = vmatpush.msra.mxu0 %v655
      %728 = vmatmul.f32.gmra.mxu0 %v672
      %v729 = vpop.f32.mrf.mxu0
      %v730 = vadd.f32 0.0, %v729
      %731 = vmatmul.f32.gmra.mxu0 %v675
      %v732 = vpop.f32.mrf.mxu0
      %v733 = vadd.f32 0.0, %v732
      %734 = vmatmul.f32.gmra.mxu0 %v678
      %v735 = vpop.f32.mrf.mxu0
      %v736 = vadd.f32 0.0, %v735
      %737 = vmatmul.f32.gmra.mxu0 %v681
      %v738 = vpop.f32.mrf.mxu0
      %v739 = vadd.f32 0.0, %v738
      %740 = vdwg.mxu0
      %741 = vmatpush.msra.mxu0 0.0
      %742 = vmatpush.msra.mxu0 0.0
      %743 = vmatpush.msra.mxu0 0.0
      %744 = vmatpush.msra.mxu0 0.0
      %745 = vmatpush.msra.mxu0 0.0
      %746 = vmatpush.msra.mxu0 0.0
      %747 = vmatpush.msra.mxu0 0.0
      %748 = vmatpush.msra.mxu0 0.0
      %749 = vmatpush.msra.mxu0 0.0
      %750 = vmatpush.msra.mxu0 0.0
      %751 = vmatpush.msra.mxu0 0.0
      %752 = vmatpush.msra.mxu0 0.0
      %753 = vmatpush.msra.mxu0 0.0
      %754 = vmatpush.msra.mxu0 0.0
      %755 = vmatpush.msra.mxu0 0.0
      %756 = vmatpush.msra.mxu0 %v656
      %757 = vmatmul.f32.gmra.mxu0 %v672
      %v758 = vpop.f32.mrf.mxu0
      %v759 = vadd.f32 0.0, %v758
      %760 = vmatmul.f32.gmra.mxu0 %v675
      %v761 = vpop.f32.mrf.mxu0
      %v762 = vadd.f32 0.0, %v761
      %763 = vmatmul.f32.gmra.mxu0 %v678
      %v764 = vpop.f32.mrf.mxu0
      %v765 = vadd.f32 0.0, %v764
      %766 = vmatmul.f32.gmra.mxu0 %v681
      %v767 = vpop.f32.mrf.mxu0
      %v768 = vadd.f32 0.0, %v767
      %769 = vdwg.mxu0
      %770 = vmatpush.msra.mxu0 0.0
      %771 = vmatpush.msra.mxu0 0.0
      %772 = vmatpush.msra.mxu0 0.0
      %773 = vmatpush.msra.mxu0 0.0
      %774 = vmatpush.msra.mxu0 0.0
      %775 = vmatpush.msra.mxu0 0.0
      %776 = vmatpush.msra.mxu0 0.0
      %777 = vmatpush.msra.mxu0 0.0
      %778 = vmatpush.msra.mxu0 0.0
      %779 = vmatpush.msra.mxu0 0.0
      %780 = vmatpush.msra.mxu0 0.0
      %781 = vmatpush.msra.mxu0 0.0
      %782 = vmatpush.msra.mxu0 0.0
      %783 = vmatpush.msra.mxu0 0.0
      %784 = vmatpush.msra.mxu0 0.0
      %785 = vmatpush.msra.mxu0 %v657
      %786 = vmatmul.f32.gmra.mxu0 %v672
      %v787 = vpop.f32.mrf.mxu0
      %v788 = vadd.f32 0.0, %v787
      %789 = vmatmul.f32.gmra.mxu0 %v675
      %v790 = vpop.f32.mrf.mxu0
      %v791 = vadd.f32 0.0, %v790
      %792 = vmatmul.f32.gmra.mxu0 %v678
      %v793 = vpop.f32.mrf.mxu0
      %v794 = vadd.f32 0.0, %v793
      %795 = vmatmul.f32.gmra.mxu0 %v681
      %v796 = vpop.f32.mrf.mxu0
      %v797 = vadd.f32 0.0, %v796
      %798 = vdwg.mxu0
      %799 = vmatpush.msra.mxu0 0.0
      %800 = vmatpush.msra.mxu0 0.0
      %801 = vmatpush.msra.mxu0 0.0
      %802 = vmatpush.msra.mxu0 0.0
      %803 = vmatpush.msra.mxu0 0.0
      %804 = vmatpush.msra.mxu0 0.0
      %805 = vmatpush.msra.mxu0 0.0
      %806 = vmatpush.msra.mxu0 0.0
      %807 = vmatpush.msra.mxu0 0.0
      %808 = vmatpush.msra.mxu0 0.0
      %809 = vmatpush.msra.mxu0 0.0
      %810 = vmatpush.msra.mxu0 0.0
      %811 = vmatpush.msra.mxu0 0.0
      %812 = vmatpush.msra.mxu0 0.0
      %813 = vmatpush.msra.mxu0 0.0
      %814 = vmatpush.msra.mxu0 %v658
      %815 = vmatmul.f32.gmra.mxu0 %v672
      %v816 = vpop.f32.mrf.mxu0
      %v817 = vadd.f32 0.0, %v816
      %818 = vmatmul.f32.gmra.mxu0 %v675
      %v819 = vpop.f32.mrf.mxu0
      %v820 = vadd.f32 0.0, %v819
      %821 = vmatmul.f32.gmra.mxu0 %v678
      %v822 = vpop.f32.mrf.mxu0
      %v823 = vadd.f32 0.0, %v822
      %824 = vmatmul.f32.gmra.mxu0 %v681
      %v825 = vpop.f32.mrf.mxu0
      %v826 = vadd.f32 0.0, %v825
      %827 = vdwg.mxu0
      %828 = vmatpush.msra.mxu0 0.0
      %829 = vmatpush.msra.mxu0 0.0
      %830 = vmatpush.msra.mxu0 0.0
      %831 = vmatpush.msra.mxu0 0.0
      %832 = vmatpush.msra.mxu0 0.0
      %833 = vmatpush.msra.mxu0 0.0
      %834 = vmatpush.msra.mxu0 0.0
      %835 = vmatpush.msra.mxu0 0.0
      %836 = vmatpush.msra.mxu0 0.0
      %837 = vmatpush.msra.mxu0 0.0
      %838 = vmatpush.msra.mxu0 0.0
      %839 = vmatpush.msra.mxu0 0.0
      %840 = vmatpush.msra.mxu0 0.0
      %841 = vmatpush.msra.mxu0 0.0
      %842 = vmatpush.msra.mxu0 0.0
      %843 = vmatpush.msra.mxu0 %v659
      %844 = vmatmul.f32.gmra.mxu0 %v672
      %v845 = vpop.f32.mrf.mxu0
      %v846 = vadd.f32 0.0, %v845
      %847 = vmatmul.f32.gmra.mxu0 %v675
      %v848 = vpop.f32.mrf.mxu0
      %v849 = vadd.f32 0.0, %v848
      %850 = vmatmul.f32.gmra.mxu0 %v678
      %v851 = vpop.f32.mrf.mxu0
      %v852 = vadd.f32 0.0, %v851
      %853 = vmatmul.f32.gmra.mxu0 %v681
      %v854 = vpop.f32.mrf.mxu0
      %v855 = vadd.f32 0.0, %v854
      %856 = vdwg.mxu0
      %857 = vmatpush.msra.mxu0 0.0
      %858 = vmatpush.msra.mxu0 0.0
      %859 = vmatpush.msra.mxu0 0.0
      %860 = vmatpush.msra.mxu0 0.0
      %861 = vmatpush.msra.mxu0 0.0
      %862 = vmatpush.msra.mxu0 0.0
      %863 = vmatpush.msra.mxu0 0.0
      %864 = vmatpush.msra.mxu0 0.0
      %865 = vmatpush.msra.mxu0 0.0
      %866 = vmatpush.msra.mxu0 0.0
      %867 = vmatpush.msra.mxu0 0.0
      %868 = vmatpush.msra.mxu0 0.0
      %869 = vmatpush.msra.mxu0 0.0
      %870 = vmatpush.msra.mxu0 0.0
      %871 = vmatpush.msra.mxu0 0.0
      %872 = vmatpush.msra.mxu0 %v660
      %873 = vmatmul.f32.gmra.mxu0 %v672
      %v874 = vpop.f32.mrf.mxu0
      %v875 = vadd.f32 0.0, %v874
      %876 = vmatmul.f32.gmra.mxu0 %v675
      %v877 = vpop.f32.mrf.mxu0
      %v878 = vadd.f32 0.0, %v877
      %879 = vmatmul.f32.gmra.mxu0 %v678
      %v880 = vpop.f32.mrf.mxu0
      %v881 = vadd.f32 0.0, %v880
      %882 = vmatmul.f32.gmra.mxu0 %v681
      %v883 = vpop.f32.mrf.mxu0
      %v884 = vadd.f32 0.0, %v883
      %885 = vdwg.mxu0
      %886 = vmatpush.msra.mxu0 0.0
      %887 = vmatpush.msra.mxu0 0.0
      %888 = vmatpush.msra.mxu0 0.0
      %889 = vmatpush.msra.mxu0 0.0
      %890 = vmatpush.msra.mxu0 0.0
      %891 = vmatpush.msra.mxu0 0.0
      %892 = vmatpush.msra.mxu0 0.0
      %893 = vmatpush.msra.mxu0 0.0
      %894 = vmatpush.msra.mxu0 0.0
      %895 = vmatpush.msra.mxu0 0.0
      %896 = vmatpush.msra.mxu0 0.0
      %897 = vmatpush.msra.mxu0 0.0
      %898 = vmatpush.msra.mxu0 0.0
      %899 = vmatpush.msra.mxu0 0.0
      %900 = vmatpush.msra.mxu0 0.0
      %901 = vmatpush.msra.mxu0 %v661
      %902 = vmatmul.f32.gmra.mxu0 %v672
      %v903 = vpop.f32.mrf.mxu0
      %v904 = vadd.f32 0.0, %v903
      %905 = vmatmul.f32.gmra.mxu0 %v675
      %v906 = vpop.f32.mrf.mxu0
      %v907 = vadd.f32 0.0, %v906
      %908 = vmatmul.f32.gmra.mxu0 %v678
      %v909 = vpop.f32.mrf.mxu0
      %v910 = vadd.f32 0.0, %v909
      %911 = vmatmul.f32.gmra.mxu0 %v681
      %v912 = vpop.f32.mrf.mxu0
      %v913 = vadd.f32 0.0, %v912
      %914 = vdwg.mxu0
      %915 = vmatpush.msra.mxu0 0.0
      %916 = vmatpush.msra.mxu0 0.0
      %917 = vmatpush.msra.mxu0 0.0
      %918 = vmatpush.msra.mxu0 0.0
      %919 = vmatpush.msra.mxu0 0.0
      %920 = vmatpush.msra.mxu0 0.0
      %921 = vmatpush.msra.mxu0 0.0
      %922 = vmatpush.msra.mxu0 0.0
      %923 = vmatpush.msra.mxu0 0.0
      %924 = vmatpush.msra.mxu0 0.0
      %925 = vmatpush.msra.mxu0 0.0
      %926 = vmatpush.msra.mxu0 0.0
      %927 = vmatpush.msra.mxu0 0.0
      %928 = vmatpush.msra.mxu0 0.0
      %929 = vmatpush.msra.mxu0 0.0
      %930 = vmatpush.msra.mxu0 %v662
      %931 = vmatmul.f32.gmra.mxu0 %v672
      %v932 = vpop.f32.mrf.mxu0
      %v933 = vadd.f32 0.0, %v932
      %934 = vmatmul.f32.gmra.mxu0 %v675
      %v935 = vpop.f32.mrf.mxu0
      %v936 = vadd.f32 0.0, %v935
      %937 = vmatmul.f32.gmra.mxu0 %v678
      %v938 = vpop.f32.mrf.mxu0
      %v939 = vadd.f32 0.0, %v938
      %940 = vmatmul.f32.gmra.mxu0 %v681
      %v941 = vpop.f32.mrf.mxu0
      %v942 = vadd.f32 0.0, %v941
      %943 = vdwg.mxu0
      %944 = vmatpush.msra.mxu0 0.0
      %945 = vmatpush.msra.mxu0 0.0
      %946 = vmatpush.msra.mxu0 0.0
      %947 = vmatpush.msra.mxu0 0.0
      %948 = vmatpush.msra.mxu0 0.0
      %949 = vmatpush.msra.mxu0 0.0
      %950 = vmatpush.msra.mxu0 0.0
      %951 = vmatpush.msra.mxu0 0.0
      %952 = vmatpush.msra.mxu0 0.0
      %953 = vmatpush.msra.mxu0 0.0
      %954 = vmatpush.msra.mxu0 0.0
      %955 = vmatpush.msra.mxu0 0.0
      %956 = vmatpush.msra.mxu0 0.0
      %957 = vmatpush.msra.mxu0 0.0
      %958 = vmatpush.msra.mxu0 0.0
      %959 = vmatpush.msra.mxu0 %v663
      %960 = vmatmul.f32.gmra.mxu0 %v672
      %v961 = vpop.f32.mrf.mxu0
      %v962 = vadd.f32 0.0, %v961
      %963 = vmatmul.f32.gmra.mxu0 %v675
      %v964 = vpop.f32.mrf.mxu0
      %v965 = vadd.f32 0.0, %v964
      %966 = vmatmul.f32.gmra.mxu0 %v678
      %v967 = vpop.f32.mrf.mxu0
      %v968 = vadd.f32 0.0, %v967
      %969 = vmatmul.f32.gmra.mxu0 %v681
      %v970 = vpop.f32.mrf.mxu0
      %v971 = vadd.f32 0.0, %v970
      %972 = vdwg.mxu0
      %973 = vmatpush.msra.mxu0 0.0
      %974 = vmatpush.msra.mxu0 0.0
      %975 = vmatpush.msra.mxu0 0.0
      %976 = vmatpush.msra.mxu0 0.0
      %977 = vmatpush.msra.mxu0 0.0
      %978 = vmatpush.msra.mxu0 0.0
      %979 = vmatpush.msra.mxu0 0.0
      %980 = vmatpush.msra.mxu0 0.0
      %981 = vmatpush.msra.mxu0 0.0
      %982 = vmatpush.msra.mxu0 0.0
      %983 = vmatpush.msra.mxu0 0.0
      %984 = vmatpush.msra.mxu0 0.0
      %985 = vmatpush.msra.mxu0 0.0
      %986 = vmatpush.msra.mxu0 0.0
      %987 = vmatpush.msra.mxu0 0.0
      %988 = vmatpush.msra.mxu0 %v664
      %989 = vmatmul.f32.gmra.mxu0 %v672
      %v990 = vpop.f32.mrf.mxu0
      %v991 = vadd.f32 0.0, %v990
      %992 = vmatmul.f32.gmra.mxu0 %v675
      %v993 = vpop.f32.mrf.mxu0
      %v994 = vadd.f32 0.0, %v993
      %995 = vmatmul.f32.gmra.mxu0 %v678
      %v996 = vpop.f32.mrf.mxu0
      %v997 = vadd.f32 0.0, %v996
      %998 = vmatmul.f32.gmra.mxu0 %v681
      %v999 = vpop.f32.mrf.mxu0
      %v1000 = vadd.f32 0.0, %v999
      %1001 = vdwg.mxu0
      %1002 = vmatpush.msra.mxu0 0.0
      %1003 = vmatpush.msra.mxu0 0.0
      %1004 = vmatpush.msra.mxu0 0.0
      %1005 = vmatpush.msra.mxu0 0.0
      %1006 = vmatpush.msra.mxu0 0.0
      %1007 = vmatpush.msra.mxu0 0.0
      %1008 = vmatpush.msra.mxu0 0.0
      %1009 = vmatpush.msra.mxu0 0.0
      %1010 = vmatpush.msra.mxu0 0.0
      %1011 = vmatpush.msra.mxu0 0.0
      %1012 = vmatpush.msra.mxu0 0.0
      %1013 = vmatpush.msra.mxu0 0.0
      %1014 = vmatpush.msra.mxu0 0.0
      %1015 = vmatpush.msra.mxu0 0.0
      %1016 = vmatpush.msra.mxu0 0.0
      %1017 = vmatpush.msra.mxu0 %v665
      %1018 = vmatmul.f32.gmra.mxu0 %v672
      %v1019 = vpop.f32.mrf.mxu0
      %v1020 = vadd.f32 0.0, %v1019
      %1021 = vmatmul.f32.gmra.mxu0 %v675
      %v1022 = vpop.f32.mrf.mxu0
      %v1023 = vadd.f32 0.0, %v1022
      %1024 = vmatmul.f32.gmra.mxu0 %v678
      %v1025 = vpop.f32.mrf.mxu0
      %v1026 = vadd.f32 0.0, %v1025
      %1027 = vmatmul.f32.gmra.mxu0 %v681
      %v1028 = vpop.f32.mrf.mxu0
      %v1029 = vadd.f32 0.0, %v1028
      %1030 = vdwg.mxu0
      %1031 = vmatpush.msra.mxu0 0.0
      %1032 = vmatpush.msra.mxu0 0.0
      %1033 = vmatpush.msra.mxu0 0.0
      %1034 = vmatpush.msra.mxu0 0.0
      %1035 = vmatpush.msra.mxu0 0.0
      %1036 = vmatpush.msra.mxu0 0.0
      %1037 = vmatpush.msra.mxu0 0.0
      %1038 = vmatpush.msra.mxu0 0.0
      %1039 = vmatpush.msra.mxu0 0.0
      %1040 = vmatpush.msra.mxu0 0.0
      %1041 = vmatpush.msra.mxu0 0.0
      %1042 = vmatpush.msra.mxu0 0.0
      %1043 = vmatpush.msra.mxu0 0.0
      %1044 = vmatpush.msra.mxu0 0.0
      %1045 = vmatpush.msra.mxu0 0.0
      %1046 = vmatpush.msra.mxu0 %v666
      %1047 = vmatmul.f32.gmra.mxu0 %v672
      %v1048 = vpop.f32.mrf.mxu0
      %v1049 = vadd.f32 0.0, %v1048
      %1050 = vmatmul.f32.gmra.mxu0 %v675
      %v1051 = vpop.f32.mrf.mxu0
      %v1052 = vadd.f32 0.0, %v1051
      %1053 = vmatmul.f32.gmra.mxu0 %v678
      %v1054 = vpop.f32.mrf.mxu0
      %v1055 = vadd.f32 0.0, %v1054
      %1056 = vmatmul.f32.gmra.mxu0 %v681
      %v1057 = vpop.f32.mrf.mxu0
      %v1058 = vadd.f32 0.0, %v1057
      %1059 = vdwg.mxu0
      %1060 = vmatpush.msra.mxu0 0.0
      %1061 = vmatpush.msra.mxu0 0.0
      %1062 = vmatpush.msra.mxu0 0.0
      %1063 = vmatpush.msra.mxu0 0.0
      %1064 = vmatpush.msra.mxu0 0.0
      %1065 = vmatpush.msra.mxu0 0.0
      %1066 = vmatpush.msra.mxu0 0.0
      %1067 = vmatpush.msra.mxu0 0.0
      %1068 = vmatpush.msra.mxu0 0.0
      %1069 = vmatpush.msra.mxu0 0.0
      %1070 = vmatpush.msra.mxu0 0.0
      %1071 = vmatpush.msra.mxu0 0.0
      %1072 = vmatpush.msra.mxu0 0.0
      %1073 = vmatpush.msra.mxu0 0.0
      %1074 = vmatpush.msra.mxu0 0.0
      %1075 = vmatpush.msra.mxu0 %v667
      %1076 = vmatmul.f32.gmra.mxu0 %v672
      %v1077 = vpop.f32.mrf.mxu0
      %v1078 = vadd.f32 0.0, %v1077
      %1079 = vmatmul.f32.gmra.mxu0 %v675
      %v1080 = vpop.f32.mrf.mxu0
      %v1081 = vadd.f32 0.0, %v1080
      %1082 = vmatmul.f32.gmra.mxu0 %v678
      %v1083 = vpop.f32.mrf.mxu0
      %v1084 = vadd.f32 0.0, %v1083
      %1085 = vmatmul.f32.gmra.mxu0 %v681
      %v1086 = vpop.f32.mrf.mxu0
      %v1087 = vadd.f32 0.0, %v1086
      %1088 = vdwg.mxu0
      %1089 = vmatpush.msra.mxu0 0.0
      %1090 = vmatpush.msra.mxu0 0.0
      %1091 = vmatpush.msra.mxu0 0.0
      %1092 = vmatpush.msra.mxu0 0.0
      %1093 = vmatpush.msra.mxu0 0.0
      %1094 = vmatpush.msra.mxu0 0.0
      %1095 = vmatpush.msra.mxu0 0.0
      %1096 = vmatpush.msra.mxu0 0.0
      %1097 = vmatpush.msra.mxu0 0.0
      %1098 = vmatpush.msra.mxu0 0.0
      %1099 = vmatpush.msra.mxu0 0.0
      %1100 = vmatpush.msra.mxu0 0.0
      %1101 = vmatpush.msra.mxu0 0.0
      %1102 = vmatpush.msra.mxu0 0.0
      %1103 = vmatpush.msra.mxu0 0.0
      %1104 = vmatpush.msra.mxu0 %v668
      %1105 = vmatmul.f32.gmra.mxu0 %v672
      %v1106 = vpop.f32.mrf.mxu0
      %v1107 = vadd.f32 0.0, %v1106
      %1108 = vmatmul.f32.gmra.mxu0 %v675
      %v1109 = vpop.f32.mrf.mxu0
      %v1110 = vadd.f32 0.0, %v1109
      %1111 = vmatmul.f32.gmra.mxu0 %v678
      %v1112 = vpop.f32.mrf.mxu0
      %v1113 = vadd.f32 0.0, %v1112
      %1114 = vmatmul.f32.gmra.mxu0 %v681
      %v1115 = vpop.f32.mrf.mxu0
      %v1116 = vadd.f32 0.0, %v1115
      %1117 = vdwg.mxu0
      %1118 = vmatpush.msra.mxu0 0.0
      %1119 = vmatpush.msra.mxu0 0.0
      %1120 = vmatpush.msra.mxu0 0.0
      %1121 = vmatpush.msra.mxu0 0.0
      %1122 = vmatpush.msra.mxu0 0.0
      %1123 = vmatpush.msra.mxu0 0.0
      %1124 = vmatpush.msra.mxu0 0.0
      %1125 = vmatpush.msra.mxu0 0.0
      %1126 = vmatpush.msra.mxu0 0.0
      %1127 = vmatpush.msra.mxu0 0.0
      %1128 = vmatpush.msra.mxu0 0.0
      %1129 = vmatpush.msra.mxu0 0.0
      %1130 = vmatpush.msra.mxu0 0.0
      %1131 = vmatpush.msra.mxu0 0.0
      %1132 = vmatpush.msra.mxu0 0.0
      %1133 = vmatpush.msra.mxu0 %v669
      %1134 = vmatmul.f32.gmra.mxu0 %v672
      %v1135 = vpop.f32.mrf.mxu0
      %v1136 = vadd.f32 0.0, %v1135
      %1137 = vmatmul.f32.gmra.mxu0 %v675
      %v1138 = vpop.f32.mrf.mxu0
      %v1139 = vadd.f32 0.0, %v1138
      %1140 = vmatmul.f32.gmra.mxu0 %v678
      %v1141 = vpop.f32.mrf.mxu0
      %v1142 = vadd.f32 0.0, %v1141
      %1143 = vmatmul.f32.gmra.mxu0 %v681
      %v1144 = vpop.f32.mrf.mxu0
      %v1145 = vadd.f32 0.0, %v1144
      %1146 = vdwg.mxu0
      %1147 = vmatpush.msra.mxu0 %v565
      %1148 = vmatpush.msra.mxu0 %v549
      %1149 = vmatpush.msra.mxu0 %v533
      %1150 = vmatpush.msra.mxu0 %v517
      %1151 = vmatpush.msra.mxu0 %v501
      %1152 = vmatpush.msra.mxu0 %v485
      %1153 = vmatpush.msra.mxu0 %v469
      %1154 = vmatpush.msra.mxu0 %v453
      %1155 = vmatpush.msra.mxu0 %v437
      %1156 = vmatpush.msra.mxu0 %v421
      %1157 = vmatpush.msra.mxu0 %v405
      %1158 = vmatpush.msra.mxu0 %v389
      %1159 = vmatpush.msra.mxu0 %v373
      %1160 = vmatpush.msra.mxu0 %v357
      %1161 = vmatpush.msra.mxu0 %v341
      %1162 = vmatpush.msra.mxu0 %v325
      %1163 = vmatmul.f32.gmra.mxu0 %v317
      %v1164 = vpop.f32.mrf.mxu0
      %v1165 = vadd.f32 %v701, %v1164
      %1166 = vmatmul.f32.gmra.mxu0 %v318
      %v1167 = vpop.f32.mrf.mxu0
      %v1168 = vadd.f32 %v704, %v1167
      %1169 = vmatmul.f32.gmra.mxu0 %v319
      %v1170 = vpop.f32.mrf.mxu0
      %v1171 = vadd.f32 %v707, %v1170
      %1172 = vmatmul.f32.gmra.mxu0 %v320
      %v1173 = vpop.f32.mrf.mxu0
      %v1174 = vadd.f32 %v710, %v1173
      %1175 = vdwg.mxu0
      %1176 = vmatpush.msra.mxu0 %v566
      %1177 = vmatpush.msra.mxu0 %v550
      %1178 = vmatpush.msra.mxu0 %v534
      %1179 = vmatpush.msra.mxu0 %v518
      %1180 = vmatpush.msra.mxu0 %v502
      %1181 = vmatpush.msra.mxu0 %v486
      %1182 = vmatpush.msra.mxu0 %v470
      %1183 = vmatpush.msra.mxu0 %v454
      %1184 = vmatpush.msra.mxu0 %v438
      %1185 = vmatpush.msra.mxu0 %v422
      %1186 = vmatpush.msra.mxu0 %v406
      %1187 = vmatpush.msra.mxu0 %v390
      %1188 = vmatpush.msra.mxu0 %v374
      %1189 = vmatpush.msra.mxu0 %v358
      %1190 = vmatpush.msra.mxu0 %v342
      %1191 = vmatpush.msra.mxu0 %v326
      %1192 = vmatmul.f32.gmra.mxu0 %v317
      %v1193 = vpop.f32.mrf.mxu0
      %v1194 = vadd.f32 %v730, %v1193
      %1195 = vmatmul.f32.gmra.mxu0 %v318
      %v1196 = vpop.f32.mrf.mxu0
      %v1197 = vadd.f32 %v733, %v1196
      %1198 = vmatmul.f32.gmra.mxu0 %v319
      %v1199 = vpop.f32.mrf.mxu0
      %v1200 = vadd.f32 %v736, %v1199
      %1201 = vmatmul.f32.gmra.mxu0 %v320
      %v1202 = vpop.f32.mrf.mxu0
      %v1203 = vadd.f32 %v739, %v1202
      %1204 = vdwg.mxu0
      %1205 = vmatpush.msra.mxu0 %v567
      %1206 = vmatpush.msra.mxu0 %v551
      %1207 = vmatpush.msra.mxu0 %v535
      %1208 = vmatpush.msra.mxu0 %v519
      %1209 = vmatpush.msra.mxu0 %v503
      %1210 = vmatpush.msra.mxu0 %v487
      %1211 = vmatpush.msra.mxu0 %v471
      %1212 = vmatpush.msra.mxu0 %v455
      %1213 = vmatpush.msra.mxu0 %v439
      %1214 = vmatpush.msra.mxu0 %v423
      %1215 = vmatpush.msra.mxu0 %v407
      %1216 = vmatpush.msra.mxu0 %v391
      %1217 = vmatpush.msra.mxu0 %v375
      %1218 = vmatpush.msra.mxu0 %v359
      %1219 = vmatpush.msra.mxu0 %v343
      %1220 = vmatpush.msra.mxu0 %v327
      %1221 = vmatmul.f32.gmra.mxu0 %v317
      %v1222 = vpop.f32.mrf.mxu0
      %v1223 = vadd.f32 %v759, %v1222
      %1224 = vmatmul.f32.gmra.mxu0 %v318
      %v1225 = vpop.f32.mrf.mxu0
      %v1226 = vadd.f32 %v762, %v1225
      %1227 = vmatmul.f32.gmra.mxu0 %v319
      %v1228 = vpop.f32.mrf.mxu0
      %v1229 = vadd.f32 %v765, %v1228
      %1230 = vmatmul.f32.gmra.mxu0 %v320
      %v1231 = vpop.f32.mrf.mxu0
      %v1232 = vadd.f32 %v768, %v1231
      %1233 = vdwg.mxu0
      %1234 = vmatpush.msra.mxu0 %v568
      %1235 = vmatpush.msra.mxu0 %v552
      %1236 = vmatpush.msra.mxu0 %v536
      %1237 = vmatpush.msra.mxu0 %v520
      %1238 = vmatpush.msra.mxu0 %v504
      %1239 = vmatpush.msra.mxu0 %v488
      %1240 = vmatpush.msra.mxu0 %v472
      %1241 = vmatpush.msra.mxu0 %v456
      %1242 = vmatpush.msra.mxu0 %v440
      %1243 = vmatpush.msra.mxu0 %v424
      %1244 = vmatpush.msra.mxu0 %v408
      %1245 = vmatpush.msra.mxu0 %v392
      %1246 = vmatpush.msra.mxu0 %v376
      %1247 = vmatpush.msra.mxu0 %v360
      %1248 = vmatpush.msra.mxu0 %v344
      %1249 = vmatpush.msra.mxu0 %v328
      %1250 = vmatmul.f32.gmra.mxu0 %v317
      %v1251 = vpop.f32.mrf.mxu0
      %v1252 = vadd.f32 %v788, %v1251
      %1253 = vmatmul.f32.gmra.mxu0 %v318
      %v1254 = vpop.f32.mrf.mxu0
      %v1255 = vadd.f32 %v791, %v1254
      %1256 = vmatmul.f32.gmra.mxu0 %v319
      %v1257 = vpop.f32.mrf.mxu0
      %v1258 = vadd.f32 %v794, %v1257
      %1259 = vmatmul.f32.gmra.mxu0 %v320
      %v1260 = vpop.f32.mrf.mxu0
      %v1261 = vadd.f32 %v797, %v1260
      %1262 = vdwg.mxu0
      %1263 = vmatpush.msra.mxu0 %v569
      %1264 = vmatpush.msra.mxu0 %v553
      %1265 = vmatpush.msra.mxu0 %v537
      %1266 = vmatpush.msra.mxu0 %v521
      %1267 = vmatpush.msra.mxu0 %v505
      %1268 = vmatpush.msra.mxu0 %v489
      %1269 = vmatpush.msra.mxu0 %v473
      %1270 = vmatpush.msra.mxu0 %v457
      %1271 = vmatpush.msra.mxu0 %v441
      %1272 = vmatpush.msra.mxu0 %v425
      %1273 = vmatpush.msra.mxu0 %v409
      %1274 = vmatpush.msra.mxu0 %v393
      %1275 = vmatpush.msra.mxu0 %v377
      %1276 = vmatpush.msra.mxu0 %v361
      %1277 = vmatpush.msra.mxu0 %v345
      %1278 = vmatpush.msra.mxu0 %v329
      %1279 = vmatmul.f32.gmra.mxu0 %v317
      %v1280 = vpop.f32.mrf.mxu0
      %v1281 = vadd.f32 %v817, %v1280
      %1282 = vmatmul.f32.gmra.mxu0 %v318
      %v1283 = vpop.f32.mrf.mxu0
      %v1284 = vadd.f32 %v820, %v1283
      %1285 = vmatmul.f32.gmra.mxu0 %v319
      %v1286 = vpop.f32.mrf.mxu0
      %v1287 = vadd.f32 %v823, %v1286
      %1288 = vmatmul.f32.gmra.mxu0 %v320
      %v1289 = vpop.f32.mrf.mxu0
      %v1290 = vadd.f32 %v826, %v1289
      %1291 = vdwg.mxu0
      %1292 = vmatpush.msra.mxu0 %v570
      %1293 = vmatpush.msra.mxu0 %v554
      %1294 = vmatpush.msra.mxu0 %v538
      %1295 = vmatpush.msra.mxu0 %v522
      %1296 = vmatpush.msra.mxu0 %v506
      %1297 = vmatpush.msra.mxu0 %v490
      %1298 = vmatpush.msra.mxu0 %v474
      %1299 = vmatpush.msra.mxu0 %v458
      %1300 = vmatpush.msra.mxu0 %v442
      %1301 = vmatpush.msra.mxu0 %v426
      %1302 = vmatpush.msra.mxu0 %v410
      %1303 = vmatpush.msra.mxu0 %v394
      %1304 = vmatpush.msra.mxu0 %v378
      %1305 = vmatpush.msra.mxu0 %v362
      %1306 = vmatpush.msra.mxu0 %v346
      %1307 = vmatpush.msra.mxu0 %v330
      %1308 = vmatmul.f32.gmra.mxu0 %v317
      %v1309 = vpop.f32.mrf.mxu0
      %v1310 = vadd.f32 %v846, %v1309
      %1311 = vmatmul.f32.gmra.mxu0 %v318
      %v1312 = vpop.f32.mrf.mxu0
      %v1313 = vadd.f32 %v849, %v1312
      %1314 = vmatmul.f32.gmra.mxu0 %v319
      %v1315 = vpop.f32.mrf.mxu0
      %v1316 = vadd.f32 %v852, %v1315
      %1317 = vmatmul.f32.gmra.mxu0 %v320
      %v1318 = vpop.f32.mrf.mxu0
      %v1319 = vadd.f32 %v855, %v1318
      %1320 = vdwg.mxu0
      %1321 = vmatpush.msra.mxu0 %v571
      %1322 = vmatpush.msra.mxu0 %v555
      %1323 = vmatpush.msra.mxu0 %v539
      %1324 = vmatpush.msra.mxu0 %v523
      %1325 = vmatpush.msra.mxu0 %v507
      %1326 = vmatpush.msra.mxu0 %v491
      %1327 = vmatpush.msra.mxu0 %v475
      %1328 = vmatpush.msra.mxu0 %v459
      %1329 = vmatpush.msra.mxu0 %v443
      %1330 = vmatpush.msra.mxu0 %v427
      %1331 = vmatpush.msra.mxu0 %v411
      %1332 = vmatpush.msra.mxu0 %v395
      %1333 = vmatpush.msra.mxu0 %v379
      %1334 = vmatpush.msra.mxu0 %v363
      %1335 = vmatpush.msra.mxu0 %v347
      %1336 = vmatpush.msra.mxu0 %v331
      %1337 = vmatmul.f32.gmra.mxu0 %v317
      %v1338 = vpop.f32.mrf.mxu0
      %v1339 = vadd.f32 %v875, %v1338
      %1340 = vmatmul.f32.gmra.mxu0 %v318
      %v1341 = vpop.f32.mrf.mxu0
      %v1342 = vadd.f32 %v878, %v1341
      %1343 = vmatmul.f32.gmra.mxu0 %v319
      %v1344 = vpop.f32.mrf.mxu0
      %v1345 = vadd.f32 %v881, %v1344
      %1346 = vmatmul.f32.gmra.mxu0 %v320
      %v1347 = vpop.f32.mrf.mxu0
      %v1348 = vadd.f32 %v884, %v1347
      %1349 = vdwg.mxu0
      %1350 = vmatpush.msra.mxu0 %v572
      %1351 = vmatpush.msra.mxu0 %v556
      %1352 = vmatpush.msra.mxu0 %v540
      %1353 = vmatpush.msra.mxu0 %v524
      %1354 = vmatpush.msra.mxu0 %v508
      %1355 = vmatpush.msra.mxu0 %v492
      %1356 = vmatpush.msra.mxu0 %v476
      %1357 = vmatpush.msra.mxu0 %v460
      %1358 = vmatpush.msra.mxu0 %v444
      %1359 = vmatpush.msra.mxu0 %v428
      %1360 = vmatpush.msra.mxu0 %v412
      %1361 = vmatpush.msra.mxu0 %v396
      %1362 = vmatpush.msra.mxu0 %v380
      %1363 = vmatpush.msra.mxu0 %v364
      %1364 = vmatpush.msra.mxu0 %v348
      %1365 = vmatpush.msra.mxu0 %v332
      %1366 = vmatmul.f32.gmra.mxu0 %v317
      %v1367 = vpop.f32.mrf.mxu0
      %v1368 = vadd.f32 %v904, %v1367
      %1369 = vmatmul.f32.gmra.mxu0 %v318
      %v1370 = vpop.f32.mrf.mxu0
      %v1371 = vadd.f32 %v907, %v1370
      %1372 = vmatmul.f32.gmra.mxu0 %v319
      %v1373 = vpop.f32.mrf.mxu0
      %v1374 = vadd.f32 %v910, %v1373
      %1375 = vmatmul.f32.gmra.mxu0 %v320
      %v1376 = vpop.f32.mrf.mxu0
      %v1377 = vadd.f32 %v913, %v1376
      %1378 = vdwg.mxu0
      %1379 = vmatpush.msra.mxu0 %v573
      %1380 = vmatpush.msra.mxu0 %v557
      %1381 = vmatpush.msra.mxu0 %v541
      %1382 = vmatpush.msra.mxu0 %v525
      %1383 = vmatpush.msra.mxu0 %v509
      %1384 = vmatpush.msra.mxu0 %v493
      %1385 = vmatpush.msra.mxu0 %v477
      %1386 = vmatpush.msra.mxu0 %v461
      %1387 = vmatpush.msra.mxu0 %v445
      %1388 = vmatpush.msra.mxu0 %v429
      %1389 = vmatpush.msra.mxu0 %v413
      %1390 = vmatpush.msra.mxu0 %v397
      %1391 = vmatpush.msra.mxu0 %v381
      %1392 = vmatpush.msra.mxu0 %v365
      %1393 = vmatpush.msra.mxu0 %v349
      %1394 = vmatpush.msra.mxu0 %v333
      %1395 = vmatmul.f32.gmra.mxu0 %v317
      %v1396 = vpop.f32.mrf.mxu0
      %v1397 = vadd.f32 %v933, %v1396
      %1398 = vmatmul.f32.gmra.mxu0 %v318
      %v1399 = vpop.f32.mrf.mxu0
      %v1400 = vadd.f32 %v936, %v1399
      %1401 = vmatmul.f32.gmra.mxu0 %v319
      %v1402 = vpop.f32.mrf.mxu0
      %v1403 = vadd.f32 %v939, %v1402
      %1404 = vmatmul.f32.gmra.mxu0 %v320
      %v1405 = vpop.f32.mrf.mxu0
      %v1406 = vadd.f32 %v942, %v1405
      %1407 = vdwg.mxu0
      %1408 = vmatpush.msra.mxu0 %v574
      %1409 = vmatpush.msra.mxu0 %v558
      %1410 = vmatpush.msra.mxu0 %v542
      %1411 = vmatpush.msra.mxu0 %v526
      %1412 = vmatpush.msra.mxu0 %v510
      %1413 = vmatpush.msra.mxu0 %v494
      %1414 = vmatpush.msra.mxu0 %v478
      %1415 = vmatpush.msra.mxu0 %v462
      %1416 = vmatpush.msra.mxu0 %v446
      %1417 = vmatpush.msra.mxu0 %v430
      %1418 = vmatpush.msra.mxu0 %v414
      %1419 = vmatpush.msra.mxu0 %v398
      %1420 = vmatpush.msra.mxu0 %v382
      %1421 = vmatpush.msra.mxu0 %v366
      %1422 = vmatpush.msra.mxu0 %v350
      %1423 = vmatpush.msra.mxu0 %v334
      %1424 = vmatmul.f32.gmra.mxu0 %v317
      %v1425 = vpop.f32.mrf.mxu0
      %v1426 = vadd.f32 %v962, %v1425
      %1427 = vmatmul.f32.gmra.mxu0 %v318
      %v1428 = vpop.f32.mrf.mxu0
      %v1429 = vadd.f32 %v965, %v1428
      %1430 = vmatmul.f32.gmra.mxu0 %v319
      %v1431 = vpop.f32.mrf.mxu0
      %v1432 = vadd.f32 %v968, %v1431
      %1433 = vmatmul.f32.gmra.mxu0 %v320
      %v1434 = vpop.f32.mrf.mxu0
      %v1435 = vadd.f32 %v971, %v1434
      %1436 = vdwg.mxu0
      %1437 = vmatpush.msra.mxu0 %v575
      %1438 = vmatpush.msra.mxu0 %v559
      %1439 = vmatpush.msra.mxu0 %v543
      %1440 = vmatpush.msra.mxu0 %v527
      %1441 = vmatpush.msra.mxu0 %v511
      %1442 = vmatpush.msra.mxu0 %v495
      %1443 = vmatpush.msra.mxu0 %v479
      %1444 = vmatpush.msra.mxu0 %v463
      %1445 = vmatpush.msra.mxu0 %v447
      %1446 = vmatpush.msra.mxu0 %v431
      %1447 = vmatpush.msra.mxu0 %v415
      %1448 = vmatpush.msra.mxu0 %v399
      %1449 = vmatpush.msra.mxu0 %v383
      %1450 = vmatpush.msra.mxu0 %v367
      %1451 = vmatpush.msra.mxu0 %v351
      %1452 = vmatpush.msra.mxu0 %v335
      %1453 = vmatmul.f32.gmra.mxu0 %v317
      %v1454 = vpop.f32.mrf.mxu0
      %v1455 = vadd.f32 %v991, %v1454
      %1456 = vmatmul.f32.gmra.mxu0 %v318
      %v1457 = vpop.f32.mrf.mxu0
      %v1458 = vadd.f32 %v994, %v1457
      %1459 = vmatmul.f32.gmra.mxu0 %v319
      %v1460 = vpop.f32.mrf.mxu0
      %v1461 = vadd.f32 %v997, %v1460
      %1462 = vmatmul.f32.gmra.mxu0 %v320
      %v1463 = vpop.f32.mrf.mxu0
      %v1464 = vadd.f32 %v1000, %v1463
      %1465 = vdwg.mxu0
      %1466 = vmatpush.msra.mxu0 %v576
      %1467 = vmatpush.msra.mxu0 %v560
      %1468 = vmatpush.msra.mxu0 %v544
      %1469 = vmatpush.msra.mxu0 %v528
      %1470 = vmatpush.msra.mxu0 %v512
      %1471 = vmatpush.msra.mxu0 %v496
      %1472 = vmatpush.msra.mxu0 %v480
      %1473 = vmatpush.msra.mxu0 %v464
      %1474 = vmatpush.msra.mxu0 %v448
      %1475 = vmatpush.msra.mxu0 %v432
      %1476 = vmatpush.msra.mxu0 %v416
      %1477 = vmatpush.msra.mxu0 %v400
      %1478 = vmatpush.msra.mxu0 %v384
      %1479 = vmatpush.msra.mxu0 %v368
      %1480 = vmatpush.msra.mxu0 %v352
      %1481 = vmatpush.msra.mxu0 %v336
      %1482 = vmatmul.f32.gmra.mxu0 %v317
      %v1483 = vpop.f32.mrf.mxu0
      %v1484 = vadd.f32 %v1020, %v1483
      %1485 = vmatmul.f32.gmra.mxu0 %v318
      %v1486 = vpop.f32.mrf.mxu0
      %v1487 = vadd.f32 %v1023, %v1486
      %1488 = vmatmul.f32.gmra.mxu0 %v319
      %v1489 = vpop.f32.mrf.mxu0
      %v1490 = vadd.f32 %v1026, %v1489
      %1491 = vmatmul.f32.gmra.mxu0 %v320
      %v1492 = vpop.f32.mrf.mxu0
      %v1493 = vadd.f32 %v1029, %v1492
      %1494 = vdwg.mxu0
      %1495 = vmatpush.msra.mxu0 %v577
      %1496 = vmatpush.msra.mxu0 %v561
      %1497 = vmatpush.msra.mxu0 %v545
      %1498 = vmatpush.msra.mxu0 %v529
      %1499 = vmatpush.msra.mxu0 %v513
      %1500 = vmatpush.msra.mxu0 %v497
      %1501 = vmatpush.msra.mxu0 %v481
      %1502 = vmatpush.msra.mxu0 %v465
      %1503 = vmatpush.msra.mxu0 %v449
      %1504 = vmatpush.msra.mxu0 %v433
      %1505 = vmatpush.msra.mxu0 %v417
      %1506 = vmatpush.msra.mxu0 %v401
      %1507 = vmatpush.msra.mxu0 %v385
      %1508 = vmatpush.msra.mxu0 %v369
      %1509 = vmatpush.msra.mxu0 %v353
      %1510 = vmatpush.msra.mxu0 %v337
      %1511 = vmatmul.f32.gmra.mxu0 %v317
      %v1512 = vpop.f32.mrf.mxu0
      %v1513 = vadd.f32 %v1049, %v1512
      %1514 = vmatmul.f32.gmra.mxu0 %v318
      %v1515 = vpop.f32.mrf.mxu0
      %v1516 = vadd.f32 %v1052, %v1515
      %1517 = vmatmul.f32.gmra.mxu0 %v319
      %v1518 = vpop.f32.mrf.mxu0
      %v1519 = vadd.f32 %v1055, %v1518
      %1520 = vmatmul.f32.gmra.mxu0 %v320
      %v1521 = vpop.f32.mrf.mxu0
      %v1522 = vadd.f32 %v1058, %v1521
      %1523 = vdwg.mxu0
      %1524 = vmatpush.msra.mxu0 %v578
      %1525 = vmatpush.msra.mxu0 %v562
      %1526 = vmatpush.msra.mxu0 %v546
      %1527 = vmatpush.msra.mxu0 %v530
      %1528 = vmatpush.msra.mxu0 %v514
      %1529 = vmatpush.msra.mxu0 %v498
      %1530 = vmatpush.msra.mxu0 %v482
      %1531 = vmatpush.msra.mxu0 %v466
      %1532 = vmatpush.msra.mxu0 %v450
      %1533 = vmatpush.msra.mxu0 %v434
      %1534 = vmatpush.msra.mxu0 %v418
      %1535 = vmatpush.msra.mxu0 %v402
      %1536 = vmatpush.msra.mxu0 %v386
      %1537 = vmatpush.msra.mxu0 %v370
      %1538 = vmatpush.msra.mxu0 %v354
      %1539 = vmatpush.msra.mxu0 %v338
      %1540 = vmatmul.f32.gmra.mxu0 %v317
      %v1541 = vpop.f32.mrf.mxu0
      %v1542 = vadd.f32 %v1078, %v1541
      %1543 = vmatmul.f32.gmra.mxu0 %v318
      %v1544 = vpop.f32.mrf.mxu0
      %v1545 = vadd.f32 %v1081, %v1544
      %1546 = vmatmul.f32.gmra.mxu0 %v319
      %v1547 = vpop.f32.mrf.mxu0
      %v1548 = vadd.f32 %v1084, %v1547
      %1549 = vmatmul.f32.gmra.mxu0 %v320
      %v1550 = vpop.f32.mrf.mxu0
      %v1551 = vadd.f32 %v1087, %v1550
      %1552 = vdwg.mxu0
      %1553 = vmatpush.msra.mxu0 %v579
      %1554 = vmatpush.msra.mxu0 %v563
      %1555 = vmatpush.msra.mxu0 %v547
      %1556 = vmatpush.msra.mxu0 %v531
      %1557 = vmatpush.msra.mxu0 %v515
      %1558 = vmatpush.msra.mxu0 %v499
      %1559 = vmatpush.msra.mxu0 %v483
      %1560 = vmatpush.msra.mxu0 %v467
      %1561 = vmatpush.msra.mxu0 %v451
      %1562 = vmatpush.msra.mxu0 %v435
      %1563 = vmatpush.msra.mxu0 %v419
      %1564 = vmatpush.msra.mxu0 %v403
      %1565 = vmatpush.msra.mxu0 %v387
      %1566 = vmatpush.msra.mxu0 %v371
      %1567 = vmatpush.msra.mxu0 %v355
      %1568 = vmatpush.msra.mxu0 %v339
      %1569 = vmatmul.f32.gmra.mxu0 %v317
      %v1570 = vpop.f32.mrf.mxu0
      %v1571 = vadd.f32 %v1107, %v1570
      %1572 = vmatmul.f32.gmra.mxu0 %v318
      %v1573 = vpop.f32.mrf.mxu0
      %v1574 = vadd.f32 %v1110, %v1573
      %1575 = vmatmul.f32.gmra.mxu0 %v319
      %v1576 = vpop.f32.mrf.mxu0
      %v1577 = vadd.f32 %v1113, %v1576
      %1578 = vmatmul.f32.gmra.mxu0 %v320
      %v1579 = vpop.f32.mrf.mxu0
      %v1580 = vadd.f32 %v1116, %v1579
      %1581 = vdwg.mxu0
      %1582 = vmatpush.msra.mxu0 %v580
      %1583 = vmatpush.msra.mxu0 %v564
      %1584 = vmatpush.msra.mxu0 %v548
      %1585 = vmatpush.msra.mxu0 %v532
      %1586 = vmatpush.msra.mxu0 %v516
      %1587 = vmatpush.msra.mxu0 %v500
      %1588 = vmatpush.msra.mxu0 %v484
      %1589 = vmatpush.msra.mxu0 %v468
      %1590 = vmatpush.msra.mxu0 %v452
      %1591 = vmatpush.msra.mxu0 %v436
      %1592 = vmatpush.msra.mxu0 %v420
      %1593 = vmatpush.msra.mxu0 %v404
      %1594 = vmatpush.msra.mxu0 %v388
      %1595 = vmatpush.msra.mxu0 %v372
      %1596 = vmatpush.msra.mxu0 %v356
      %1597 = vmatpush.msra.mxu0 %v340
      %1598 = vmatmul.f32.gmra.mxu0 %v317
      %v1599 = vpop.f32.mrf.mxu0
      %v1600 = vadd.f32 %v1136, %v1599
      %1601 = vmatmul.f32.gmra.mxu0 %v318
      %v1602 = vpop.f32.mrf.mxu0
      %v1603 = vadd.f32 %v1139, %v1602
      %1604 = vmatmul.f32.gmra.mxu0 %v319
      %v1605 = vpop.f32.mrf.mxu0
      %v1606 = vadd.f32 %v1142, %v1605
      %1607 = vmatmul.f32.gmra.mxu0 %v320
      %v1608 = vpop.f32.mrf.mxu0
      %v1609 = vadd.f32 %v1145, %v1608
      %1610 = vdwg.mxu0
      %v1611 = vld [vmem:[%s2] sm:$0xff]
      %v1612 = vld [vmem:[%s2 + $0x8] sm:$0xff]
      %v1615 = vperm.slane %v1611, 0
      %v1616 = vperm.slane %v1611, 1
      %v1617 = vperm.slane %v1611, 2
      %v1618 = vperm.slane %v1611, 3
      %v1619 = vperm.slane %v1611, 4
      %v1620 = vperm.slane %v1611, 5
      %v1621 = vperm.slane %v1611, 6
      %v1622 = vperm.slane %v1611, 7
      %v1623 = vperm.slane %v1612, 0
      %v1624 = vperm.slane %v1612, 1
      %v1625 = vperm.slane %v1612, 2
      %v1626 = vperm.slane %v1612, 3
      %v1627 = vperm.slane %v1612, 4
      %v1628 = vperm.slane %v1612, 5
      %v1629 = vperm.slane %v1612, 6
      %v1630 = vperm.slane %v1612, 7
      %1647 = vset.pattern.permute.xlu0 0
      %1648 = vperm.xlu0 %1647, %v321
      %v1649 = vpop.permute.xlu0 %1648
      %1651 = vset.pattern.permute.xlu0 0
      %1652 = vperm.xlu0 %1651, %v322
      %v1653 = vpop.permute.xlu0 %1652
      %1655 = vset.pattern.permute.xlu0 0
      %1656 = vperm.xlu0 %1655, %v323
      %v1657 = vpop.permute.xlu0 %1656
      %1659 = vset.pattern.permute.xlu0 0
      %1660 = vperm.xlu0 %1659, %v324
      %v1661 = vpop.permute.xlu0 %1660
      %vm1663 = vcmp.lt.f32.partialorder %v1615, %v1649
      %vm1664 = vcmp.lt.f32.partialorder %v1616, %v1649
      %vm1665 = vcmp.lt.f32.partialorder %v1617, %v1649
      %vm1666 = vcmp.lt.f32.partialorder %v1618, %v1649
      %vm1667 = vcmp.lt.f32.partialorder %v1619, %v1649
      %vm1668 = vcmp.lt.f32.partialorder %v1620, %v1649
      %vm1669 = vcmp.lt.f32.partialorder %v1621, %v1649
      %vm1670 = vcmp.lt.f32.partialorder %v1622, %v1649
      %vm1671 = vcmp.lt.f32.partialorder %v1623, %v1649
      %vm1672 = vcmp.lt.f32.partialorder %v1624, %v1649
      %vm1673 = vcmp.lt.f32.partialorder %v1625, %v1649
      %vm1674 = vcmp.lt.f32.partialorder %v1626, %v1649
      %vm1675 = vcmp.lt.f32.partialorder %v1627, %v1649
      %vm1676 = vcmp.lt.f32.partialorder %v1628, %v1649
      %vm1677 = vcmp.lt.f32.partialorder %v1629, %v1649
      %vm1678 = vcmp.lt.f32.partialorder %v1630, %v1649
      %vm1679 = vcmp.lt.f32.partialorder %v1615, %v1653
      %vm1680 = vcmp.lt.f32.partialorder %v1616, %v1653
      %vm1681 = vcmp.lt.f32.partialorder %v1617, %v1653
      %vm1682 = vcmp.lt.f32.partialorder %v1618, %v1653
      %vm1683 = vcmp.lt.f32.partialorder %v1619, %v1653
      %vm1684 = vcmp.lt.f32.partialorder %v1620, %v1653
      %vm1685 = vcmp.lt.f32.partialorder %v1621, %v1653
      %vm1686 = vcmp.lt.f32.partialorder %v1622, %v1653
      %vm1687 = vcmp.lt.f32.partialorder %v1623, %v1653
      %vm1688 = vcmp.lt.f32.partialorder %v1624, %v1653
      %vm1689 = vcmp.lt.f32.partialorder %v1625, %v1653
      %vm1690 = vcmp.lt.f32.partialorder %v1626, %v1653
      %vm1691 = vcmp.lt.f32.partialorder %v1627, %v1653
      %vm1692 = vcmp.lt.f32.partialorder %v1628, %v1653
      %vm1693 = vcmp.lt.f32.partialorder %v1629, %v1653
      %vm1694 = vcmp.lt.f32.partialorder %v1630, %v1653
      %vm1695 = vcmp.lt.f32.partialorder %v1615, %v1657
      %vm1696 = vcmp.lt.f32.partialorder %v1616, %v1657
      %vm1697 = vcmp.lt.f32.partialorder %v1617, %v1657
      %vm1698 = vcmp.lt.f32.partialorder %v1618, %v1657
      %vm1699 = vcmp.lt.f32.partialorder %v1619, %v1657
      %vm1700 = vcmp.lt.f32.partialorder %v1620, %v1657
      %vm1701 = vcmp.lt.f32.partialorder %v1621, %v1657
      %vm1702 = vcmp.lt.f32.partialorder %v1622, %v1657
      %vm1703 = vcmp.lt.f32.partialorder %v1623, %v1657
      %vm1704 = vcmp.lt.f32.partialorder %v1624, %v1657
      %vm1705 = vcmp.lt.f32.partialorder %v1625, %v1657
      %vm1706 = vcmp.lt.f32.partialorder %v1626, %v1657
      %vm1707 = vcmp.lt.f32.partialorder %v1627, %v1657
      %vm1708 = vcmp.lt.f32.partialorder %v1628, %v1657
      %vm1709 = vcmp.lt.f32.partialorder %v1629, %v1657
      %vm1710 = vcmp.lt.f32.partialorder %v1630, %v1657
      %vm1711 = vcmp.lt.f32.partialorder %v1615, %v1661
      %vm1712 = vcmp.lt.f32.partialorder %v1616, %v1661
      %vm1713 = vcmp.lt.f32.partialorder %v1617, %v1661
      %vm1714 = vcmp.lt.f32.partialorder %v1618, %v1661
      %vm1715 = vcmp.lt.f32.partialorder %v1619, %v1661
      %vm1716 = vcmp.lt.f32.partialorder %v1620, %v1661
      %vm1717 = vcmp.lt.f32.partialorder %v1621, %v1661
      %vm1718 = vcmp.lt.f32.partialorder %v1622, %v1661
      %vm1719 = vcmp.lt.f32.partialorder %v1623, %v1661
      %vm1720 = vcmp.lt.f32.partialorder %v1624, %v1661
      %vm1721 = vcmp.lt.f32.partialorder %v1625, %v1661
      %vm1722 = vcmp.lt.f32.partialorder %v1626, %v1661
      %vm1723 = vcmp.lt.f32.partialorder %v1627, %v1661
      %vm1724 = vcmp.lt.f32.partialorder %v1628, %v1661
      %vm1725 = vcmp.lt.f32.partialorder %v1629, %v1661
      %vm1726 = vcmp.lt.f32.partialorder %v1630, %v1661
      %v1727 = vsel %vm1663, %v1165, 0.0
      %v1728 = vsel %vm1664, %v1194, 0.0
      %v1729 = vsel %vm1665, %v1223, 0.0
      %v1730 = vsel %vm1666, %v1252, 0.0
      %v1731 = vsel %vm1667, %v1281, 0.0
      %v1732 = vsel %vm1668, %v1310, 0.0
      %v1733 = vsel %vm1669, %v1339, 0.0
      %v1734 = vsel %vm1670, %v1368, 0.0
      %v1735 = vsel %vm1671, %v1397, 0.0
      %v1736 = vsel %vm1672, %v1426, 0.0
      %v1737 = vsel %vm1673, %v1455, 0.0
      %v1738 = vsel %vm1674, %v1484, 0.0
      %v1739 = vsel %vm1675, %v1513, 0.0
      %v1740 = vsel %vm1676, %v1542, 0.0
      %v1741 = vsel %vm1677, %v1571, 0.0
      %v1742 = vsel %vm1678, %v1600, 0.0
      %v1743 = vsel %vm1679, %v1168, 0.0
      %v1744 = vsel %vm1680, %v1197, 0.0
      %v1745 = vsel %vm1681, %v1226, 0.0
      %v1746 = vsel %vm1682, %v1255, 0.0
      %v1747 = vsel %vm1683, %v1284, 0.0
      %v1748 = vsel %vm1684, %v1313, 0.0
      %v1749 = vsel %vm1685, %v1342, 0.0
      %v1750 = vsel %vm1686, %v1371, 0.0
      %v1751 = vsel %vm1687, %v1400, 0.0
      %v1752 = vsel %vm1688, %v1429, 0.0
      %v1753 = vsel %vm1689, %v1458, 0.0
      %v1754 = vsel %vm1690, %v1487, 0.0
      %v1755 = vsel %vm1691, %v1516, 0.0
      %v1756 = vsel %vm1692, %v1545, 0.0
      %v1757 = vsel %vm1693, %v1574, 0.0
      %v1758 = vsel %vm1694, %v1603, 0.0
      %v1759 = vsel %vm1695, %v1171, 0.0
      %v1760 = vsel %vm1696, %v1200, 0.0
      %v1761 = vsel %vm1697, %v1229, 0.0
      %v1762 = vsel %vm1698, %v1258, 0.0
      %v1763 = vsel %vm1699, %v1287, 0.0
      %v1764 = vsel %vm1700, %v1316, 0.0
      %v1765 = vsel %vm1701, %v1345, 0.0
      %v1766 = vsel %vm1702, %v1374, 0.0
      %v1767 = vsel %vm1703, %v1403, 0.0
      %v1768 = vsel %vm1704, %v1432, 0.0
      %v1769 = vsel %vm1705, %v1461, 0.0
      %v1770 = vsel %vm1706, %v1490, 0.0
      %v1771 = vsel %vm1707, %v1519, 0.0
      %v1772 = vsel %vm1708, %v1548, 0.0
      %v1773 = vsel %vm1709, %v1577, 0.0
      %v1774 = vsel %vm1710, %v1606, 0.0
      %v1775 = vsel %vm1711, %v1174, 0.0
      %v1776 = vsel %vm1712, %v1203, 0.0
      %v1777 = vsel %vm1713, %v1232, 0.0
      %v1778 = vsel %vm1714, %v1261, 0.0
      %v1779 = vsel %vm1715, %v1290, 0.0
      %v1780 = vsel %vm1716, %v1319, 0.0
      %v1781 = vsel %vm1717, %v1348, 0.0
      %v1782 = vsel %vm1718, %v1377, 0.0
      %v1783 = vsel %vm1719, %v1406, 0.0
      %v1784 = vsel %vm1720, %v1435, 0.0
      %v1785 = vsel %vm1721, %v1464, 0.0
      %v1786 = vsel %vm1722, %v1493, 0.0
      %v1787 = vsel %vm1723, %v1522, 0.0
      %v1788 = vsel %vm1724, %v1551, 0.0
      %v1789 = vsel %vm1725, %v1580, 0.0
      %v1790 = vsel %vm1726, %v1609, 0.0
      %v1791 = vadd.f32 %v1727, %v1743
      %v1792 = vadd.f32 %v1791, %v1759
      %v1793 = vadd.f32 %v1792, %v1775
      %v1794 = vrot.slane %v1793, 4
      %v1795 = vadd.f32 %v1793, %v1794
      %v1796 = vrot.slane %v1795, 2
      %v1797 = vadd.f32 %v1795, %v1796
      %v1798 = vrot.slane %v1797, 1
      %v1799 = vadd.f32 %v1797, %v1798
      %v1800 = vadd.f32 %v1728, %v1744
      %v1801 = vadd.f32 %v1800, %v1760
      %v1802 = vadd.f32 %v1801, %v1776
      %v1803 = vrot.slane %v1802, 4
      %v1804 = vadd.f32 %v1802, %v1803
      %v1805 = vrot.slane %v1804, 2
      %v1806 = vadd.f32 %v1804, %v1805
      %v1807 = vrot.slane %v1806, 1
      %v1808 = vadd.f32 %v1806, %v1807
      %v1809 = vadd.f32 %v1729, %v1745
      %v1810 = vadd.f32 %v1809, %v1761
      %v1811 = vadd.f32 %v1810, %v1777
      %v1812 = vrot.slane %v1811, 4
      %v1813 = vadd.f32 %v1811, %v1812
      %v1814 = vrot.slane %v1813, 2
      %v1815 = vadd.f32 %v1813, %v1814
      %v1816 = vrot.slane %v1815, 1
      %v1817 = vadd.f32 %v1815, %v1816
      %v1818 = vadd.f32 %v1730, %v1746
      %v1819 = vadd.f32 %v1818, %v1762
      %v1820 = vadd.f32 %v1819, %v1778
      %v1821 = vrot.slane %v1820, 4
      %v1822 = vadd.f32 %v1820, %v1821
      %v1823 = vrot.slane %v1822, 2
      %v1824 = vadd.f32 %v1822, %v1823
      %v1825 = vrot.slane %v1824, 1
      %v1826 = vadd.f32 %v1824, %v1825
      %v1827 = vadd.f32 %v1731, %v1747
      %v1828 = vadd.f32 %v1827, %v1763
      %v1829 = vadd.f32 %v1828, %v1779
      %v1830 = vrot.slane %v1829, 4
      %v1831 = vadd.f32 %v1829, %v1830
      %v1832 = vrot.slane %v1831, 2
      %v1833 = vadd.f32 %v1831, %v1832
      %v1834 = vrot.slane %v1833, 1
      %v1835 = vadd.f32 %v1833, %v1834
      %v1836 = vadd.f32 %v1732, %v1748
      %v1837 = vadd.f32 %v1836, %v1764
      %v1838 = vadd.f32 %v1837, %v1780
      %v1839 = vrot.slane %v1838, 4
      %v1840 = vadd.f32 %v1838, %v1839
      %v1841 = vrot.slane %v1840, 2
      %v1842 = vadd.f32 %v1840, %v1841
      %v1843 = vrot.slane %v1842, 1
      %v1844 = vadd.f32 %v1842, %v1843
      %v1845 = vadd.f32 %v1733, %v1749
      %v1846 = vadd.f32 %v1845, %v1765
      %v1847 = vadd.f32 %v1846, %v1781
      %v1848 = vrot.slane %v1847, 4
      %v1849 = vadd.f32 %v1847, %v1848
      %v1850 = vrot.slane %v1849, 2
      %v1851 = vadd.f32 %v1849, %v1850
      %v1852 = vrot.slane %v1851, 1
      %v1853 = vadd.f32 %v1851, %v1852
      %v1854 = vadd.f32 %v1734, %v1750
      %v1855 = vadd.f32 %v1854, %v1766
      %v1856 = vadd.f32 %v1855, %v1782
      %v1857 = vrot.slane %v1856, 4
      %v1858 = vadd.f32 %v1856, %v1857
      %v1859 = vrot.slane %v1858, 2
      %v1860 = vadd.f32 %v1858, %v1859
      %v1861 = vrot.slane %v1860, 1
      %v1862 = vadd.f32 %v1860, %v1861
      %v1863 = vadd.f32 %v1735, %v1751
      %v1864 = vadd.f32 %v1863, %v1767
      %v1865 = vadd.f32 %v1864, %v1783
      %v1866 = vrot.slane %v1865, 4
      %v1867 = vadd.f32 %v1865, %v1866
      %v1868 = vrot.slane %v1867, 2
      %v1869 = vadd.f32 %v1867, %v1868
      %v1870 = vrot.slane %v1869, 1
      %v1871 = vadd.f32 %v1869, %v1870
      %v1872 = vadd.f32 %v1736, %v1752
      %v1873 = vadd.f32 %v1872, %v1768
      %v1874 = vadd.f32 %v1873, %v1784
      %v1875 = vrot.slane %v1874, 4
      %v1876 = vadd.f32 %v1874, %v1875
      %v1877 = vrot.slane %v1876, 2
      %v1878 = vadd.f32 %v1876, %v1877
      %v1879 = vrot.slane %v1878, 1
      %v1880 = vadd.f32 %v1878, %v1879
      %v1881 = vadd.f32 %v1737, %v1753
      %v1882 = vadd.f32 %v1881, %v1769
      %v1883 = vadd.f32 %v1882, %v1785
      %v1884 = vrot.slane %v1883, 4
      %v1885 = vadd.f32 %v1883, %v1884
      %v1886 = vrot.slane %v1885, 2
      %v1887 = vadd.f32 %v1885, %v1886
      %v1888 = vrot.slane %v1887, 1
      %v1889 = vadd.f32 %v1887, %v1888
      %v1890 = vadd.f32 %v1738, %v1754
      %v1891 = vadd.f32 %v1890, %v1770
      %v1892 = vadd.f32 %v1891, %v1786
      %v1893 = vrot.slane %v1892, 4
      %v1894 = vadd.f32 %v1892, %v1893
      %v1895 = vrot.slane %v1894, 2
      %v1896 = vadd.f32 %v1894, %v1895
      %v1897 = vrot.slane %v1896, 1
      %v1898 = vadd.f32 %v1896, %v1897
      %v1899 = vadd.f32 %v1739, %v1755
      %v1900 = vadd.f32 %v1899, %v1771
      %v1901 = vadd.f32 %v1900, %v1787
      %v1902 = vrot.slane %v1901, 4
      %v1903 = vadd.f32 %v1901, %v1902
      %v1904 = vrot.slane %v1903, 2
      %v1905 = vadd.f32 %v1903, %v1904
      %v1906 = vrot.slane %v1905, 1
      %v1907 = vadd.f32 %v1905, %v1906
      %v1908 = vadd.f32 %v1740, %v1756
      %v1909 = vadd.f32 %v1908, %v1772
      %v1910 = vadd.f32 %v1909, %v1788
      %v1911 = vrot.slane %v1910, 4
      %v1912 = vadd.f32 %v1910, %v1911
      %v1913 = vrot.slane %v1912, 2
      %v1914 = vadd.f32 %v1912, %v1913
      %v1915 = vrot.slane %v1914, 1
      %v1916 = vadd.f32 %v1914, %v1915
      %v1917 = vadd.f32 %v1741, %v1757
      %v1918 = vadd.f32 %v1917, %v1773
      %v1919 = vadd.f32 %v1918, %v1789
      %v1920 = vrot.slane %v1919, 4
      %v1921 = vadd.f32 %v1919, %v1920
      %v1922 = vrot.slane %v1921, 2
      %v1923 = vadd.f32 %v1921, %v1922
      %v1924 = vrot.slane %v1923, 1
      %v1925 = vadd.f32 %v1923, %v1924
      %v1926 = vadd.f32 %v1742, %v1758
      %v1927 = vadd.f32 %v1926, %v1774
      %v1928 = vadd.f32 %v1927, %v1790
      %v1929 = vrot.slane %v1928, 4
      %v1930 = vadd.f32 %v1928, %v1929
      %v1931 = vrot.slane %v1930, 2
      %v1932 = vadd.f32 %v1930, %v1931
      %v1933 = vrot.slane %v1932, 1
      %v1934 = vadd.f32 %v1932, %v1933
      %v1935 = vmul.f32 %v1727, %v1727
      %v1936 = vmul.f32 %v1728, %v1728
      %v1937 = vmul.f32 %v1729, %v1729
      %v1938 = vmul.f32 %v1730, %v1730
      %v1939 = vmul.f32 %v1731, %v1731
      %v1940 = vmul.f32 %v1732, %v1732
      %v1941 = vmul.f32 %v1733, %v1733
      %v1942 = vmul.f32 %v1734, %v1734
      %v1943 = vmul.f32 %v1735, %v1735
      %v1944 = vmul.f32 %v1736, %v1736
      %v1945 = vmul.f32 %v1737, %v1737
      %v1946 = vmul.f32 %v1738, %v1738
      %v1947 = vmul.f32 %v1739, %v1739
      %v1948 = vmul.f32 %v1740, %v1740
      %v1949 = vmul.f32 %v1741, %v1741
      %v1950 = vmul.f32 %v1742, %v1742
      %v1951 = vmul.f32 %v1743, %v1743
      %v1952 = vmul.f32 %v1744, %v1744
      %v1953 = vmul.f32 %v1745, %v1745
      %v1954 = vmul.f32 %v1746, %v1746
      %v1955 = vmul.f32 %v1747, %v1747
      %v1956 = vmul.f32 %v1748, %v1748
      %v1957 = vmul.f32 %v1749, %v1749
      %v1958 = vmul.f32 %v1750, %v1750
      %v1959 = vmul.f32 %v1751, %v1751
      %v1960 = vmul.f32 %v1752, %v1752
      %v1961 = vmul.f32 %v1753, %v1753
      %v1962 = vmul.f32 %v1754, %v1754
      %v1963 = vmul.f32 %v1755, %v1755
      %v1964 = vmul.f32 %v1756, %v1756
      %v1965 = vmul.f32 %v1757, %v1757
      %v1966 = vmul.f32 %v1758, %v1758
      %v1967 = vmul.f32 %v1759, %v1759
      %v1968 = vmul.f32 %v1760, %v1760
      %v1969 = vmul.f32 %v1761, %v1761
      %v1970 = vmul.f32 %v1762, %v1762
      %v1971 = vmul.f32 %v1763, %v1763
      %v1972 = vmul.f32 %v1764, %v1764
      %v1973 = vmul.f32 %v1765, %v1765
      %v1974 = vmul.f32 %v1766, %v1766
      %v1975 = vmul.f32 %v1767, %v1767
      %v1976 = vmul.f32 %v1768, %v1768
      %v1977 = vmul.f32 %v1769, %v1769
      %v1978 = vmul.f32 %v1770, %v1770
      %v1979 = vmul.f32 %v1771, %v1771
      %v1980 = vmul.f32 %v1772, %v1772
      %v1981 = vmul.f32 %v1773, %v1773
      %v1982 = vmul.f32 %v1774, %v1774
      %v1983 = vmul.f32 %v1775, %v1775
      %v1984 = vmul.f32 %v1776, %v1776
      %v1985 = vmul.f32 %v1777, %v1777
      %v1986 = vmul.f32 %v1778, %v1778
      %v1987 = vmul.f32 %v1779, %v1779
      %v1988 = vmul.f32 %v1780, %v1780
      %v1989 = vmul.f32 %v1781, %v1781
      %v1990 = vmul.f32 %v1782, %v1782
      %v1991 = vmul.f32 %v1783, %v1783
      %v1992 = vmul.f32 %v1784, %v1784
      %v1993 = vmul.f32 %v1785, %v1785
      %v1994 = vmul.f32 %v1786, %v1786
      %v1995 = vmul.f32 %v1787, %v1787
      %v1996 = vmul.f32 %v1788, %v1788
      %v1997 = vmul.f32 %v1789, %v1789
      %v1998 = vmul.f32 %v1790, %v1790
      %v1999 = vadd.f32 %v1935, %v1951
      %v2000 = vadd.f32 %v1999, %v1967
      %v2001 = vadd.f32 %v2000, %v1983
      %v2002 = vrot.slane %v2001, 4
      %v2003 = vadd.f32 %v2001, %v2002
      %v2004 = vrot.slane %v2003, 2
      %v2005 = vadd.f32 %v2003, %v2004
      %v2006 = vrot.slane %v2005, 1
      %v2007 = vadd.f32 %v2005, %v2006
      %v2008 = vadd.f32 %v1936, %v1952
      %v2009 = vadd.f32 %v2008, %v1968
      %v2010 = vadd.f32 %v2009, %v1984
      %v2011 = vrot.slane %v2010, 4
      %v2012 = vadd.f32 %v2010, %v2011
      %v2013 = vrot.slane %v2012, 2
      %v2014 = vadd.f32 %v2012, %v2013
      %v2015 = vrot.slane %v2014, 1
      %v2016 = vadd.f32 %v2014, %v2015
      %v2017 = vadd.f32 %v1937, %v1953
      %v2018 = vadd.f32 %v2017, %v1969
      %v2019 = vadd.f32 %v2018, %v1985
      %v2020 = vrot.slane %v2019, 4
      %v2021 = vadd.f32 %v2019, %v2020
      %v2022 = vrot.slane %v2021, 2
      %v2023 = vadd.f32 %v2021, %v2022
      %v2024 = vrot.slane %v2023, 1
      %v2025 = vadd.f32 %v2023, %v2024
      %v2026 = vadd.f32 %v1938, %v1954
      %v2027 = vadd.f32 %v2026, %v1970
      %v2028 = vadd.f32 %v2027, %v1986
      %v2029 = vrot.slane %v2028, 4
      %v2030 = vadd.f32 %v2028, %v2029
      %v2031 = vrot.slane %v2030, 2
      %v2032 = vadd.f32 %v2030, %v2031
      %v2033 = vrot.slane %v2032, 1
      %v2034 = vadd.f32 %v2032, %v2033
      %v2035 = vadd.f32 %v1939, %v1955
      %v2036 = vadd.f32 %v2035, %v1971
      %v2037 = vadd.f32 %v2036, %v1987
      %v2038 = vrot.slane %v2037, 4
      %v2039 = vadd.f32 %v2037, %v2038
      %v2040 = vrot.slane %v2039, 2
      %v2041 = vadd.f32 %v2039, %v2040
      %v2042 = vrot.slane %v2041, 1
      %v2043 = vadd.f32 %v2041, %v2042
      %v2044 = vadd.f32 %v1940, %v1956
      %v2045 = vadd.f32 %v2044, %v1972
      %v2046 = vadd.f32 %v2045, %v1988
      %v2047 = vrot.slane %v2046, 4
      %v2048 = vadd.f32 %v2046, %v2047
      %v2049 = vrot.slane %v2048, 2
      %v2050 = vadd.f32 %v2048, %v2049
      %v2051 = vrot.slane %v2050, 1
      %v2052 = vadd.f32 %v2050, %v2051
      %v2053 = vadd.f32 %v1941, %v1957
      %v2054 = vadd.f32 %v2053, %v1973
      %v2055 = vadd.f32 %v2054, %v1989
      %v2056 = vrot.slane %v2055, 4
      %v2057 = vadd.f32 %v2055, %v2056
      %v2058 = vrot.slane %v2057, 2
      %v2059 = vadd.f32 %v2057, %v2058
      %v2060 = vrot.slane %v2059, 1
      %v2061 = vadd.f32 %v2059, %v2060
      %v2062 = vadd.f32 %v1942, %v1958
      %v2063 = vadd.f32 %v2062, %v1974
      %v2064 = vadd.f32 %v2063, %v1990
      %v2065 = vrot.slane %v2064, 4
      %v2066 = vadd.f32 %v2064, %v2065
      %v2067 = vrot.slane %v2066, 2
      %v2068 = vadd.f32 %v2066, %v2067
      %v2069 = vrot.slane %v2068, 1
      %v2070 = vadd.f32 %v2068, %v2069
      %v2071 = vadd.f32 %v1943, %v1959
      %v2072 = vadd.f32 %v2071, %v1975
      %v2073 = vadd.f32 %v2072, %v1991
      %v2074 = vrot.slane %v2073, 4
      %v2075 = vadd.f32 %v2073, %v2074
      %v2076 = vrot.slane %v2075, 2
      %v2077 = vadd.f32 %v2075, %v2076
      %v2078 = vrot.slane %v2077, 1
      %v2079 = vadd.f32 %v2077, %v2078
      %v2080 = vadd.f32 %v1944, %v1960
      %v2081 = vadd.f32 %v2080, %v1976
      %v2082 = vadd.f32 %v2081, %v1992
      %v2083 = vrot.slane %v2082, 4
      %v2084 = vadd.f32 %v2082, %v2083
      %v2085 = vrot.slane %v2084, 2
      %v2086 = vadd.f32 %v2084, %v2085
      %v2087 = vrot.slane %v2086, 1
      %v2088 = vadd.f32 %v2086, %v2087
      %v2089 = vadd.f32 %v1945, %v1961
      %v2090 = vadd.f32 %v2089, %v1977
      %v2091 = vadd.f32 %v2090, %v1993
      %v2092 = vrot.slane %v2091, 4
      %v2093 = vadd.f32 %v2091, %v2092
      %v2094 = vrot.slane %v2093, 2
      %v2095 = vadd.f32 %v2093, %v2094
      %v2096 = vrot.slane %v2095, 1
      %v2097 = vadd.f32 %v2095, %v2096
      %v2098 = vadd.f32 %v1946, %v1962
      %v2099 = vadd.f32 %v2098, %v1978
      %v2100 = vadd.f32 %v2099, %v1994
      %v2101 = vrot.slane %v2100, 4
      %v2102 = vadd.f32 %v2100, %v2101
      %v2103 = vrot.slane %v2102, 2
      %v2104 = vadd.f32 %v2102, %v2103
      %v2105 = vrot.slane %v2104, 1
      %v2106 = vadd.f32 %v2104, %v2105
      %v2107 = vadd.f32 %v1947, %v1963
      %v2108 = vadd.f32 %v2107, %v1979
      %v2109 = vadd.f32 %v2108, %v1995
      %v2110 = vrot.slane %v2109, 4
      %v2111 = vadd.f32 %v2109, %v2110
      %v2112 = vrot.slane %v2111, 2
      %v2113 = vadd.f32 %v2111, %v2112
      %v2114 = vrot.slane %v2113, 1
      %v2115 = vadd.f32 %v2113, %v2114
      %v2116 = vadd.f32 %v1948, %v1964
      %v2117 = vadd.f32 %v2116, %v1980
      %v2118 = vadd.f32 %v2117, %v1996
      %v2119 = vrot.slane %v2118, 4
      %v2120 = vadd.f32 %v2118, %v2119
      %v2121 = vrot.slane %v2120, 2
      %v2122 = vadd.f32 %v2120, %v2121
      %v2123 = vrot.slane %v2122, 1
      %v2124 = vadd.f32 %v2122, %v2123
      %v2125 = vadd.f32 %v1949, %v1965
      %v2126 = vadd.f32 %v2125, %v1981
      %v2127 = vadd.f32 %v2126, %v1997
      %v2128 = vrot.slane %v2127, 4
      %v2129 = vadd.f32 %v2127, %v2128
      %v2130 = vrot.slane %v2129, 2
      %v2131 = vadd.f32 %v2129, %v2130
      %v2132 = vrot.slane %v2131, 1
      %v2133 = vadd.f32 %v2131, %v2132
      %v2134 = vadd.f32 %v1950, %v1966
      %v2135 = vadd.f32 %v2134, %v1982
      %v2136 = vadd.f32 %v2135, %v1998
      %v2137 = vrot.slane %v2136, 4
      %v2138 = vadd.f32 %v2136, %v2137
      %v2139 = vrot.slane %v2138, 2
      %v2140 = vadd.f32 %v2138, %v2139
      %v2141 = vrot.slane %v2140, 1
      %v2142 = vadd.f32 %v2140, %v2141
      %vm2143 = vcmask 1040384
      %v2144 = vsel %vm2143, %v1799, %v2007
      %v2145 = vsel %vm2143, %v1808, %v2016
      %v2146 = vsel %vm2143, %v1817, %v2025
      %v2147 = vsel %vm2143, %v1826, %v2034
      %v2148 = vsel %vm2143, %v1835, %v2043
      %v2149 = vsel %vm2143, %v1844, %v2052
      %v2150 = vsel %vm2143, %v1853, %v2061
      %v2151 = vsel %vm2143, %v1862, %v2070
      %v2152 = vsel %vm2143, %v1871, %v2079
      %v2153 = vsel %vm2143, %v1880, %v2088
      %v2154 = vsel %vm2143, %v1889, %v2097
      %v2155 = vsel %vm2143, %v1898, %v2106
      %v2156 = vsel %vm2143, %v1907, %v2115
      %v2157 = vsel %vm2143, %v1916, %v2124
      %v2158 = vsel %vm2143, %v1925, %v2133
      %v2159 = vsel %vm2143, %v1934, %v2142
      %v2176 = vrot.slane %v2145, 6
      %v2177 = vrot.slane %v2146, 4
      %v2178 = vrot.slane %v2147, 2
      %v2179 = vrot.slane %v2149, 6
      %v2180 = vrot.slane %v2150, 4
      %v2181 = vrot.slane %v2151, 2
      %v2182 = vrot.slane %v2153, 6
      %v2183 = vrot.slane %v2154, 4
      %v2184 = vrot.slane %v2155, 2
      %v2185 = vrot.slane %v2157, 6
      %v2186 = vrot.slane %v2158, 4
      %v2187 = vrot.slane %v2159, 2
      %vm2188 = vcmask 1041408
      %v2189 = vsel %vm2188, %v2144, %v2176
      %vm2190 = vcmask 1045508
      %v2191 = vsel %vm2190, %v2177, %v2178
      %vm2192 = vcmask 1043456
      %v2193 = vsel %vm2192, %v2189, %v2191
      %v2194 = vsel %vm2188, %v2148, %v2179
      %v2195 = vsel %vm2190, %v2180, %v2181
      %v2196 = vsel %vm2192, %v2194, %v2195
      %v2197 = vsel %vm2188, %v2152, %v2182
      %v2198 = vsel %vm2190, %v2183, %v2184
      %v2199 = vsel %vm2192, %v2197, %v2198
      %v2200 = vsel %vm2188, %v2156, %v2185
      %v2201 = vsel %vm2190, %v2186, %v2187
      %v2202 = vsel %vm2192, %v2200, %v2201
      %2207 = vst [vmem:[%s310] sm:$0xff] %v2193
      %2208 = vst [vmem:[%s310 + $0x8] sm:$0xff] %v2196
      %2209 = vst [vmem:[%s310 + $0x10] sm:$0xff] %v2199
      %2210 = vst [vmem:[%s310 + $0x18] sm:$0xff] %v2202
      %v2211 = vmax.f32 %v1727, %v1735
      %v2212 = vmax.f32 %v1736, %v1728
      %v2213 = vmax.f32 %v1737, %v1729
      %v2214 = vmax.f32 %v1738, %v1730
      %v2215 = vmax.f32 %v1739, %v1731
      %v2216 = vmax.f32 %v1740, %v1732
      %v2217 = vmax.f32 %v1741, %v1733
      %v2218 = vmax.f32 %v1742, %v1734
      %v2219 = vmax.f32 %v1743, %v1751
      %v2220 = vmax.f32 %v1752, %v1744
      %v2221 = vmax.f32 %v1753, %v1745
      %v2222 = vmax.f32 %v1754, %v1746
      %v2223 = vmax.f32 %v1755, %v1747
      %v2224 = vmax.f32 %v1756, %v1748
      %v2225 = vmax.f32 %v1757, %v1749
      %v2226 = vmax.f32 %v1758, %v1750
      %v2227 = vmax.f32 %v1759, %v1767
      %v2228 = vmax.f32 %v1768, %v1760
      %v2229 = vmax.f32 %v1769, %v1761
      %v2230 = vmax.f32 %v1770, %v1762
      %v2231 = vmax.f32 %v1771, %v1763
      %v2232 = vmax.f32 %v1772, %v1764
      %v2233 = vmax.f32 %v1773, %v1765
      %v2234 = vmax.f32 %v1774, %v1766
      %v2235 = vmax.f32 %v1775, %v1783
      %v2236 = vmax.f32 %v1784, %v1776
      %v2237 = vmax.f32 %v1785, %v1777
      %v2238 = vmax.f32 %v1786, %v1778
      %v2239 = vmax.f32 %v1787, %v1779
      %v2240 = vmax.f32 %v1788, %v1780
      %v2241 = vmax.f32 %v1789, %v1781
      %v2242 = vmax.f32 %v1790, %v1782
      %v2243 = vmin.f32 %v1727, %v1735
      %v2244 = vmin.f32 %v1736, %v1728
      %v2245 = vmin.f32 %v1737, %v1729
      %v2246 = vmin.f32 %v1738, %v1730
      %v2247 = vmin.f32 %v1739, %v1731
      %v2248 = vmin.f32 %v1740, %v1732
      %v2249 = vmin.f32 %v1741, %v1733
      %v2250 = vmin.f32 %v1742, %v1734
      %v2251 = vmin.f32 %v1743, %v1751
      %v2252 = vmin.f32 %v1752, %v1744
      %v2253 = vmin.f32 %v1753, %v1745
      %v2254 = vmin.f32 %v1754, %v1746
      %v2255 = vmin.f32 %v1755, %v1747
      %v2256 = vmin.f32 %v1756, %v1748
      %v2257 = vmin.f32 %v1757, %v1749
      %v2258 = vmin.f32 %v1758, %v1750
      %v2259 = vmin.f32 %v1759, %v1767
      %v2260 = vmin.f32 %v1768, %v1760
      %v2261 = vmin.f32 %v1769, %v1761
      %v2262 = vmin.f32 %v1770, %v1762
      %v2263 = vmin.f32 %v1771, %v1763
      %v2264 = vmin.f32 %v1772, %v1764
      %v2265 = vmin.f32 %v1773, %v1765
      %v2266 = vmin.f32 %v1774, %v1766
      %v2267 = vmin.f32 %v1775, %v1783
      %v2268 = vmin.f32 %v1784, %v1776
      %v2269 = vmin.f32 %v1785, %v1777
      %v2270 = vmin.f32 %v1786, %v1778
      %v2271 = vmin.f32 %v1787, %v1779
      %v2272 = vmin.f32 %v1788, %v1780
      %v2273 = vmin.f32 %v1789, %v1781
      %v2274 = vmin.f32 %v1790, %v1782
      %v2275 = vmax.f32 %v2211, %v2215
      %v2276 = vmax.f32 %v2216, %v2212
      %v2277 = vmax.f32 %v2217, %v2213
      %v2278 = vmax.f32 %v2218, %v2214
      %v2279 = vmax.f32 %v2219, %v2223
      %v2280 = vmax.f32 %v2224, %v2220
      %v2281 = vmax.f32 %v2225, %v2221
      %v2282 = vmax.f32 %v2226, %v2222
      %v2283 = vmax.f32 %v2227, %v2231
      %v2284 = vmax.f32 %v2232, %v2228
      %v2285 = vmax.f32 %v2233, %v2229
      %v2286 = vmax.f32 %v2234, %v2230
      %v2287 = vmax.f32 %v2235, %v2239
      %v2288 = vmax.f32 %v2240, %v2236
      %v2289 = vmax.f32 %v2241, %v2237
      %v2290 = vmax.f32 %v2242, %v2238
      %v2291 = vmin.f32 %v2243, %v2247
      %v2292 = vmin.f32 %v2248, %v2244
      %v2293 = vmin.f32 %v2249, %v2245
      %v2294 = vmin.f32 %v2250, %v2246
      %v2295 = vmin.f32 %v2251, %v2255
      %v2296 = vmin.f32 %v2256, %v2252
      %v2297 = vmin.f32 %v2257, %v2253
      %v2298 = vmin.f32 %v2258, %v2254
      %v2299 = vmin.f32 %v2259, %v2263
      %v2300 = vmin.f32 %v2264, %v2260
      %v2301 = vmin.f32 %v2265, %v2261
      %v2302 = vmin.f32 %v2266, %v2262
      %v2303 = vmin.f32 %v2267, %v2271
      %v2304 = vmin.f32 %v2272, %v2268
      %v2305 = vmin.f32 %v2273, %v2269
      %v2306 = vmin.f32 %v2274, %v2270
      %v2307 = vmax.f32 %v2275, %v2277
      %v2308 = vmax.f32 %v2278, %v2276
      %v2309 = vmax.f32 %v2279, %v2281
      %v2310 = vmax.f32 %v2282, %v2280
      %v2311 = vmax.f32 %v2283, %v2285
      %v2312 = vmax.f32 %v2286, %v2284
      %v2313 = vmax.f32 %v2287, %v2289
      %v2314 = vmax.f32 %v2290, %v2288
      %v2315 = vmin.f32 %v2291, %v2293
      %v2316 = vmin.f32 %v2294, %v2292
      %v2317 = vmin.f32 %v2295, %v2297
      %v2318 = vmin.f32 %v2298, %v2296
      %v2319 = vmin.f32 %v2299, %v2301
      %v2320 = vmin.f32 %v2302, %v2300
      %v2321 = vmin.f32 %v2303, %v2305
      %v2322 = vmin.f32 %v2306, %v2304
      %v2323 = vmax.f32 %v2307, %v2308
      %v2324 = vmax.f32 %v2309, %v2310
      %v2325 = vmax.f32 %v2311, %v2312
      %v2326 = vmax.f32 %v2313, %v2314
      %v2327 = vmin.f32 %v2315, %v2316
      %v2328 = vmin.f32 %v2317, %v2318
      %v2329 = vmin.f32 %v2319, %v2320
      %v2330 = vmin.f32 %v2321, %v2322
      %2331 = vrot.lane.b32.xlu0 %v2323, 64
      %v2332 = vpop.permute.xlu0 %2331
      %2333 = vrot.lane.b32.xlu0 %v2324, 64
      %v2334 = vpop.permute.xlu0 %2333
      %2335 = vrot.lane.b32.xlu0 %v2325, 64
      %v2336 = vpop.permute.xlu0 %2335
      %2337 = vrot.lane.b32.xlu0 %v2326, 64
      %v2338 = vpop.permute.xlu0 %2337
      %v2339 = vlaneseq
      %v2340 = vand.u32 %v2339, 127
      %v2341 = vmax.f32 %v2323, %v2332
      %v2342 = vmax.f32 %v2324, %v2334
      %v2343 = vmax.f32 %v2325, %v2336
      %v2344 = vmax.f32 %v2326, %v2338
      %2345 = vrot.lane.b32.xlu0 %v2327, 64
      %v2346 = vpop.permute.xlu0 %2345
      %2347 = vrot.lane.b32.xlu0 %v2328, 64
      %v2348 = vpop.permute.xlu0 %2347
      %2349 = vrot.lane.b32.xlu0 %v2329, 64
      %v2350 = vpop.permute.xlu0 %2349
      %2351 = vrot.lane.b32.xlu0 %v2330, 64
      %v2352 = vpop.permute.xlu0 %2351
      %v2353 = vmin.f32 %v2327, %v2346
      %v2354 = vmin.f32 %v2328, %v2348
      %v2355 = vmin.f32 %v2329, %v2350
      %v2356 = vmin.f32 %v2330, %v2352
      %2361 = vrot.lane.b32.xlu0 %v2353, 64
      %v2362 = vpop.permute.xlu0 %2361
      %2363 = vrot.lane.b32.xlu0 %v2354, 64
      %v2364 = vpop.permute.xlu0 %2363
      %2365 = vrot.lane.b32.xlu0 %v2355, 64
      %v2366 = vpop.permute.xlu0 %2365
      %2367 = vrot.lane.b32.xlu0 %v2356, 64
      %v2368 = vpop.permute.xlu0 %2367
      %vm2373 = vcmask 523264
      %v2374 = vsel %vm2373, %v2341, %v2362
      %v2375 = vsel %vm2373, %v2342, %v2364
      %v2376 = vsel %vm2373, %v2343, %v2366
      %v2377 = vsel %vm2373, %v2344, %v2368
      %2378 = vst [vmem:[%s315] sm:$0xff] %v2374
      %2379 = vst [vmem:[%s315 + $0x8] sm:$0xff] %v2375
      %2380 = vst [vmem:[%s315 + $0x10] sm:$0xff] %v2376
      %2381 = vst [vmem:[%s315 + $0x18] sm:$0xff] %v2377
      %p2382 = scmp.lt.s32.totalorder %s19, 3
      %s2383 = scalar_select %p2382, %s19, 3
      %s2384 = smul.addr %s2383, 16
      %s2385 = smul.addr %s2384, 2
      %s2386 = scalar_lea.vmem %s6, %s2385
      %s2387 = smul.u32 4, %s19
      %p2388 = scmp.lt.s32.totalorder %s2387, 15
      %s2389 = scalar_select %p2388, %s2387, 15
      %s2390 = smul.addr %s2389, 8
      %s2391 = scalar_lea.vmem %s7, %s2390
      // Predicated region
      $region45: #{pillar_feature_net_forward.1} parent=43 // pred_check
        %p2392 = pneg %p173
      $region46: #{pillar_feature_net_forward.1} parent=43 // pred_check_branch
        %2394 = sbr.rel (%p2392) target = $region48
      $region47: #{pillar_feature_net_forward.1} parent=43 // pred_region
        _
      $region48: #{pillar_feature_net_forward.1} parent=43 // pred_fallthru
        _
      // Predicated region
      $region49: #{pillar_feature_net_forward.1} parent=43 // pred_check
        %p2395 = pneg %p199
      $region50: #{pillar_feature_net_forward.1} parent=43 // pred_check_branch
        %2397 = sbr.rel (%p2395) target = $region52
      $region51: #{pillar_feature_net_forward.1} parent=43 // pred_region
        %s2398 = smul.u32 4, %s19
      $region52: #{pillar_feature_net_forward.1} parent=43 // pred_fallthru
        _
    $region44: #{pillar_feature_net_forward.1} parent=5 // pred_fallthru
      _
    %p2399 = scmp.le.s32.totalorder 2, %s14
    // Predicated region
    $region53: #{pillar_feature_net_forward.1} parent=5 // pred_check
      %p2400 = pneg %p2399
    $region54: #{pillar_feature_net_forward.1} parent=5 // pred_check_branch
      %2402 = sbr.rel (%p2400) target = $region56
    $region55: #{pillar_feature_net_forward.1} parent=5 // pred_region
      %s2403 = ssub.s32 %s14, 2
      // Predicated region
      $region57: #{pillar_feature_net_forward.1} parent=55 // pred_check
        %p2404 = pneg %p179
      $region58: #{pillar_feature_net_forward.1} parent=55 // pred_check_branch
        %2406 = sbr.rel (%p2404) target = $region60
      $region59: #{pillar_feature_net_forward.1} parent=55 // pred_region
        %p2407 = scmp.lt.s32.totalorder %s20, 3
        %s2408 = scalar_select %p2407, %s20, 3
        %s2409 = smul.addr %s2408, 16
        %s2410 = smul.addr %s2409, 2
        %s2411 = scalar_lea.vmem %s6, %s2410
      $region60: #{pillar_feature_net_forward.1} parent=55 // pred_fallthru
        _
      // Predicated region
      $region61: #{pillar_feature_net_forward.1} parent=55 // pred_check
        %p2412 = pneg %p205
      $region62: #{pillar_feature_net_forward.1} parent=55 // pred_check_branch
        %2414 = sbr.rel (%p2412) target = $region64
      $region63: #{pillar_feature_net_forward.1} parent=55 // pred_region
        %s2415 = smul.u32 4, %s20
        %p2416 = scmp.lt.s32.totalorder %s2415, 15
        %s2417 = scalar_select %p2416, %s2415, 15
        %s2418 = smul.addr %s2417, 8
        %s2419 = scalar_lea.vmem %s7, %s2418
      $region64: #{pillar_feature_net_forward.1} parent=55 // pred_fallthru
        _
    $region56: #{pillar_feature_net_forward.1} parent=5 // pred_fallthru
      _
  $region6: #{pillar_feature_net_forward.1} parent=0 // loop_footer
    %s18 = sadd.s32 1, %s14
  $region7: #{pillar_feature_net_forward.1} parent=0 // loop_footer_branch
    %13 = sbr.rel target = $region3
  $region8: #{pillar_feature_net_forward.1} parent=0 // loop_exit
    _

</llo_original>
